<compile_context>
chip_gen: v7x
topology: tpu7x:2x2x1
jax: 0.10.0
libtpu: 0.0.40
codegen_flags: <defaults>
</compile_context>

<pallas_src>
import functools

import jax
import jax.numpy as jnp
from jax import lax
from jax.experimental import pallas as pl
from jax.experimental.pallas import tpu as pltpu


KH, KW = 7, 7          # KERNEL_SIZE = (1, 7, 7); temporal size 1 handled by N*D flattening
PH, PW = KH // 2, KW // 2
SH, SW = 2, 2          # DOWNSAMPLING=True, DOWNSAMPLING_TEMPORAL=False -> stride (1, 2, 2)


# ----------------------------- Pallas kernel --------------------------------
def _base3d_block_kernel(xe_ref, xo_ref, w_ref, b_ref, o_ref, *, group, ho, he, hodd):
    """Fused (shortcut + branch) conv with folded BN, bias and ReLU.

    xe_ref: (1, group*he,   K2) bf16  even padded image rows, `group` slices stacked in M
    xo_ref: (1, group*hodd, K2) bf16  odd  padded image rows
    w_ref : (KH, K2, N2)        bf16  banded weights (BN + shortcut folded, lane-pack block-diag)
    b_ref : (1, N2)             f32   folded bias, tiled across (pack, Wo)
    o_ref : (1, group*ho, N2)   f32
    """
    n2 = o_ref.shape[-1]
    xe = xe_ref[0]                                               # (group*he,   K2)
    xo = xo_ref[0]                                               # (group*hodd, K2)

    accs = [jnp.zeros((ho, n2), jnp.float32) for _ in range(group)]
    for ih in range(KH):                                         # exactly 7 MXU dots / step
        src, hpar = (xe, he) if ih % 2 == 0 else (xo, hodd)
        j = ih // 2                                              # static row offset
        full = jnp.dot(src, w_ref[ih],
                       preferred_element_type=jnp.float32)       # (group*hpar, N2) f32
        for p in range(group):                                   # contiguous static row blocks
            accs[p] = accs[p] + full[p * hpar + j:p * hpar + j + ho, :]

    acc = accs[0] if group == 1 else jnp.concatenate(accs, axis=0)   # (group*ho, N2)
    o_ref[0] = jnp.maximum(acc + b_ref[...], 0.0).astype(o_ref.dtype)


def _fused_conv_pallas(xe, xo, w_banded, bias_row, group, ho):
    steps, ghe, k2 = xe.shape
    ghodd = xo.shape[1]
    kh, _, n2 = w_banded.shape
    kernel = functools.partial(_base3d_block_kernel,
                               group=group, ho=ho,
                               he=ghe // group, hodd=ghodd // group)
    return pl.pallas_call(
        kernel,
        out_shape=jax.ShapeDtypeStruct((steps, group * ho, n2), jnp.float32),
        grid_spec=pltpu.PrefetchScalarGridSpec(
            num_scalar_prefetch=0,
            grid=(steps,),
            in_specs=[
                pl.BlockSpec((1, ghe, k2), lambda i: (i, 0, 0)),     # even rows
                pl.BlockSpec((1, ghodd, k2), lambda i: (i, 0, 0)),   # odd rows
                pl.BlockSpec((kh, k2, n2), lambda i: (0, 0, 0)),     # banded weight (resident)
                pl.BlockSpec((1, n2), lambda i: (0, 0)),             # folded bias
            ],
            out_specs=pl.BlockSpec((1, group * ho, n2), lambda i: (i, 0, 0)),
        ),
        compiler_params=pltpu.CompilerParams(
            dimension_semantics=("parallel",)),
    )(xe, xo, w_banded, bias_row)


# ------------------------------ JAX wrapper ----------------------------------
def _fold_weights(params):
    """Fold eval-mode BN of both paths + the 1x1x1 shortcut into one weight/bias."""
    w_comb = params["w_br"] * params["br_scale"]                         # (KH,KW,Cin,Cout)
    w_comb = w_comb.at[PH, PW].add(params["w_sc"] * params["sc_scale"])  # centre tap == strided shortcut pixel
    bias = params["br_shift"] + params["sc_shift"]                       # (Cout,)
    return w_comb, bias


def _tensorcores_per_chip():
    """Best-effort TC count (only affects grid split, never correctness)."""
    try:
        kind = jax.devices()[0].device_kind.lower()
    except Exception:
        return 2
    if "lite" in kind or "v5e" in kind or "v6e" in kind:
        return 1                                   # single-TC chips
    return 2                                       # v4 / v5p megacore, v7x


def _pick_group(npk, want_grid, max_group):
    best = 1
    for cand in range(1, max(1, min(npk, max_group)) + 1):
        if npk % cand == 0 and npk // cand >= want_grid:
            best = cand
    return best


def base3d_block_forward(x_ncdhw, params):
    """Base3DBlock forward. x_ncdhw: (N, Cin, D, H, W) f32 -> (N, Cout, D, Ho, Wo) f32."""
    n, cin, d, h, w = x_ncdhw.shape
    cout = params["w_sc"].shape[1]
    ho = (h + 2 * PH - KH) // SH + 1
    wo = (w + 2 * PW - KW) // SW + 1
    hp, wp = h + 2 * PH, w + 2 * PW
    nd = n * d
    k1 = wp * cin
    ncols = wo * cout

    w_comb, bias = _fold_weights(params)

    # channels-last, pad H/W, flatten (W, Cin) into lanes, bf16 streamed activations
    x = jnp.transpose(x_ncdhw, (0, 2, 3, 4, 1)).astype(jnp.bfloat16)    # (N,D,H,W,Cin)
    x_pad = jnp.pad(x, ((0, 0), (0, 0), (PH, PH), (PW, PW), (0, 0)))    # (N,D,hp,wp,Cin)

    # Lane packing: put `pack` (n,d) slices side-by-side in the lane dim so the
    # output last dim is >= 128 (full vst).  pack=1 when Wo*Cout is already wide.
    pack = 2 if (ncols < 128 and nd % 2 == 0) else 1
    npk = nd // pack
    k2 = pack * k1
    n2 = pack * ncols
    if pack == 2:
        slab = (x_pad.reshape(npk, 2, hp, k1)
                .transpose(0, 2, 1, 3)
                .reshape(npk, hp, k2))
    else:
        slab = x_pad.reshape(npk, hp, k1)

    slab_e = slab[:, 0::SH, :]                                          # (npk, he, k2)
    slab_o = slab[:, 1::SH, :]                                          # (npk, hodd, k2)
    he, hodd = slab_e.shape[1], slab_o.shape[1]

    # banded (Toeplitz) weight: K = Wp*Cin, N = Wo*Cout; column block `wo`
    # holds the 7 width taps (iw) of output column wo at padded cols 2*wo+iw.
    wp_idx = jnp.arange(wp)
    iw_idx = jnp.arange(KW)
    wo_idx = jnp.arange(wo)
    sel = (wp_idx[:, None, None] ==
           (SW * wo_idx[None, None, :] + iw_idx[None, :, None])).astype(jnp.float32)
    w_banded = jnp.einsum("piw,hico->hpcwo", sel, w_comb).reshape(KH, k1, ncols)
    if pack > 1:
        eye = jnp.eye(pack, dtype=w_banded.dtype)
        w_banded = jnp.einsum("ab,hkn->hakbn", eye, w_banded).reshape(KH, k2, n2)
    w_banded = w_banded.astype(jnp.bfloat16)
    bias_row = jnp.tile(bias, pack * wo).reshape(1, n2).astype(jnp.float32)

    # Group selection: grid >= 2 only when there are multiple TensorCores; cap
    # the per-step activation/output block so it stays comfortably in VMEM.
    want_grid = 2 if _tensorcores_per_chip() > 1 else 1
    per_group_bytes = (he + hodd) * k2 * 2 + ho * n2 * 4
    max_group = max(1, (4 << 20) // max(1, per_group_bytes))
    group = _pick_group(npk, want_grid, max_group)
    steps = npk // group

    xe = slab_e.reshape(steps, group * he, k2)
    xo = slab_o.reshape(steps, group * hodd, k2)

    out = _fused_conv_pallas(xe, xo, w_banded, bias_row, group, ho)     # (steps, group*ho, n2)
    out = out.reshape(steps, group, ho, pack, wo, cout)
    out = out.transpose(0, 1, 3, 2, 4, 5)                               # (steps, group, pack, ho, wo, cout)
    out = out.reshape(n, d, ho, wo, cout)
    return jnp.transpose(out, (0, 4, 1, 2, 3))                          # back to NCDHW (f32)


def make_params(key, cin, cout, eps=1e-5):
    ks = jax.random.split(key, 10)
    # conv weights (bias=False in the module)
    w_sc = 0.2 * jax.random.normal(ks[0], (cin, cout), jnp.float32)
    w_br = 0.1 * jax.random.normal(ks[1], (KH, KW, cin, cout), jnp.float32)

    # BatchNorm3d (eval mode): y = (x - mean)/sqrt(var+eps)*gamma + beta
    def bn(kg, kb, km, kv):
        gamma = 1.0 + 0.1 * jax.random.normal(kg, (cout,), jnp.float32)
        beta = 0.1 * jax.random.normal(kb, (cout,), jnp.float32)
        mean = 0.1 * jax.random.normal(km, (cout,), jnp.float32)
        var = jnp.abs(jax.random.normal(kv, (cout,), jnp.float32)) + 0.5
        scale = gamma / jnp.sqrt(var + eps)
        return scale, beta - mean * scale

    sc_scale, sc_shift = bn(ks[2], ks[3], ks[4], ks[5])
    br_scale, br_shift = bn(ks[6], ks[7], ks[8], ks[9])
    return dict(w_sc=w_sc, w_br=w_br,
                sc_scale=sc_scale, sc_shift=sc_shift,
                br_scale=br_scale, br_shift=br_shift)


# ------------------------------ references -----------------------------------
def reference_folded_bf16(x_ncdhw, params):
    """Precision-matched reference: identical bf16-rounded folded weights/inputs,
    f32 products and accumulation, tap-by-tap (no banded construction)."""
    n, cin, d, h, w = x_ncdhw.shape
    cout = params["w_sc"].shape[1]
    ho = (h + 2 * PH - KH) // SH + 1
    wo = (w + 2 * PW - KW) // SW + 1
    w_comb, bias = _fold_weights(params)
    w_comb = w_comb.astype(jnp.bfloat16).astype(jnp.float32)
    x = jnp.transpose(x_ncdhw, (0, 2, 3, 4, 1)).astype(jnp.bfloat16).astype(jnp.float32)
    xp = jnp.pad(x, ((0, 0), (0, 0), (PH, PH), (PW, PW), (0, 0)))
    acc = jnp.zeros((n, d, ho, wo, cout), jnp.float32)
    for ih in range(KH):
        for iw in range(KW):
            tap = xp[:, :, ih:ih + SH * ho:SH, iw:iw + SW * wo:SW, :]
            acc = acc + jnp.einsum("ndhwc,co->ndhwo", tap, w_comb[ih, iw])
    y = jnp.maximum(acc + bias, 0.0)
    return jnp.transpose(y, (0, 4, 1, 2, 3))


def reference_module_f32(x_ncdhw, params):
    """Unfused f32 reference matching the PyTorch module:
    relu(BN(shortcut_conv(x)) + BN(branch_conv(x)))."""
    n, cin, d, h, w = x_ncdhw.shape
    cout = params["w_sc"].shape[1]
    x = jnp.transpose(x_ncdhw, (0, 2, 3, 4, 1))                         # NDHWC f32
    w_sc5 = params["w_sc"].reshape(1, 1, 1, cin, cout)                  # DHWIO
    w_br5 = params["w_br"].reshape(1, KH, KW, cin, cout)
    dn = lax.conv_dimension_numbers(x.shape, w_br5.shape, ("NDHWC", "DHWIO", "NDHWC"))
    sc = lax.conv_general_dilated(x, w_sc5, (1, SH, SW),
                                  ((0, 0), (0, 0), (0, 0)), dimension_numbers=dn)
    br = lax.conv_general_dilated(x, w_br5, (1, SH, SW),
                                  ((0, 0), (PH, PH), (PW, PW)), dimension_numbers=dn)
    y = (sc * params["sc_scale"] + params["sc_shift"]
         + br * params["br_scale"] + params["br_shift"])
    y = jnp.maximum(y, 0.0)
    return jnp.transpose(y, (0, 4, 1, 2, 3))


if __name__ == "__main__":
    key = jax.random.PRNGKey(0)
    kx, kp = jax.random.split(key)

    # Small shapes consistent with the module defaults (NCDHW):
    # batch=2, DIM_IN=4 -> NUM_FILTERS=8, D=4, H=W=16, spatial stride 2.
    N, CIN, COUT, D, H, W = 2, 4, 8, 4, 16, 16
    x = jax.random.normal(kx, (N, CIN, D, H, W), jnp.float32)
    params = make_params(kp, CIN, COUT)

    fwd = jax.jit(base3d_block_forward)
    out = jax.block_until_ready(fwd(x, params))
    assert out.shape == (N, COUT, D, H // 2, W // 2), out.shape

    # (1) tight precision-matched check (same bf16 folded weights, f32 accumulation)
    ref_tight = jax.block_until_ready(jax.jit(reference_folded_bf16)(x, params))
    if not jnp.allclose(out, ref_tight, rtol=1e-3, atol=1e-3):
        err = float(jnp.max(jnp.abs(out - ref_tight)))
        raise AssertionError(f"mismatch vs precision-matched reference (max abs err {err:.3e})")

    # (2) module-semantics check vs unfused f32 conv+BN reference; tolerance is
    #     limited only by the kernel's bf16 activation/weight streams.
    ref_f32 = jax.block_until_ready(jax.jit(reference_module_f32)(x, params))
    if not jnp.allclose(out, ref_f32, rtol=2e-2, atol=5e-2):
        err = float(jnp.max(jnp.abs(out - ref_f32)))
        raise AssertionError(f"mismatch vs f32 module reference (max abs err {err:.3e})")

    print("KERNEL_OK")
</pallas_src>

<mosaic_0001>
module attributes {stable_mosaic.version = 11 : i64} {
  func.func @_base3d_block_kernel(%arg0: i32, %arg1: memref<1x22x176xbf16, #tpu.memory_space<vmem>>, %arg2: memref<1x22x176xbf16, #tpu.memory_space<vmem>>, %arg3: memref<7x176x128xbf16, #tpu.memory_space<vmem>>, %arg4: memref<1x128xf32, #tpu.memory_space<vmem>>, %arg5: memref<1x16x128xf32, #tpu.memory_space<vmem>>) attributes {dimension_semantics = [#tpu.dimension_semantics<parallel>], iteration_bounds = array<i64: 2>, scalar_prefetch = 0 : i64, scratch_operands = 0 : i64, tpu.core_type = #tpu.core_type<tc>, window_params = [{transform_indices = @transform_0, window_bounds = array<i64: 1, 22, 176>}, {transform_indices = @transform_1, window_bounds = array<i64: 1, 22, 176>}, {pipeline_mode = #tpu.pipeline_mode<synchronous>, transform_indices = @transform_2, window_bounds = array<i64: 7, 176, 128>}, {pipeline_mode = #tpu.pipeline_mode<synchronous>, transform_indices = @transform_3, window_bounds = array<i64: 1, 128>}, {transform_indices = @transform_4, window_bounds = array<i64: 1, 16, 128>}]} {
    %c0 = arith.constant 0 : index
    %c0_0 = arith.constant 0 : index
    %c0_1 = arith.constant 0 : index
    %0 = vector.load %arg1[%c0, %c0_0, %c0_1] : memref<1x22x176xbf16, #tpu.memory_space<vmem>>, vector<1x22x176xbf16>
    %1 = vector.shape_cast %0 : vector<1x22x176xbf16> to vector<22x176xbf16>
    %c0_2 = arith.constant 0 : index
    %c0_3 = arith.constant 0 : index
    %c0_4 = arith.constant 0 : index
    %2 = vector.load %arg2[%c0_2, %c0_3, %c0_4] : memref<1x22x176xbf16, #tpu.memory_space<vmem>>, vector<1x22x176xbf16>
    %3 = vector.shape_cast %2 : vector<1x22x176xbf16> to vector<22x176xbf16>
    %cst = arith.constant 0.000000e+00 : f32
    %4 = vector.broadcast %cst : f32 to vector<8x128xf32>
    %cst_5 = arith.constant 0.000000e+00 : f32
    %5 = vector.broadcast %cst_5 : f32 to vector<8x128xf32>
    %c0_6 = arith.constant 0 : index
    %c0_7 = arith.constant 0 : index
    %c0_8 = arith.constant 0 : index
    %6 = vector.load %arg3[%c0_6, %c0_7, %c0_8] : memref<7x176x128xbf16, #tpu.memory_space<vmem>>, vector<1x176x128xbf16>
    %7 = vector.shape_cast %6 : vector<1x176x128xbf16> to vector<176x128xbf16>
    %cst_9 = arith.constant dense<0.000000e+00> : vector<22x128xf32>
    %8 = tpu.matmul %1, %7, %cst_9 {dimension_numbers = #tpu.dot_dimension_numbers<[1], [0], [0], [1], [0, 0, 1, 1], [], []>} : vector<22x176xbf16>, vector<176x128xbf16>, vector<22x128xf32> -> vector<22x128xf32>
    %9 = vector.extract_strided_slice %8 {offsets = [0, 0], sizes = [8, 128], strides = [1, 1]} : vector<22x128xf32> to vector<8x128xf32>
    %10 = arith.addf %4, %9 : vector<8x128xf32>
    %11 = vector.extract_strided_slice %8 {offsets = [11, 0], sizes = [8, 128], strides = [1, 1]} : vector<22x128xf32> to vector<8x128xf32>
    %12 = arith.addf %5, %11 : vector<8x128xf32>
    %c1 = arith.constant 1 : index
    %c0_10 = arith.constant 0 : index
    %c0_11 = arith.constant 0 : index
    %13 = vector.load %arg3[%c1, %c0_10, %c0_11] : memref<7x176x128xbf16, #tpu.memory_space<vmem>>, vector<1x176x128xbf16>
    %14 = vector.shape_cast %13 : vector<1x176x128xbf16> to vector<176x128xbf16>
    %cst_12 = arith.constant dense<0.000000e+00> : vector<22x128xf32>
    %15 = tpu.matmul %3, %14, %cst_12 {dimension_numbers = #tpu.dot_dimension_numbers<[1], [0], [0], [1], [0, 0, 1, 1], [], []>} : vector<22x176xbf16>, vector<176x128xbf16>, vector<22x128xf32> -> vector<22x128xf32>
    %16 = vector.extract_strided_slice %15 {offsets = [0, 0], sizes = [8, 128], strides = [1, 1]} : vector<22x128xf32> to vector<8x128xf32>
    %17 = arith.addf %10, %16 : vector<8x128xf32>
    %18 = vector.extract_strided_slice %15 {offsets = [11, 0], sizes = [8, 128], strides = [1, 1]} : vector<22x128xf32> to vector<8x128xf32>
    %19 = arith.addf %12, %18 : vector<8x128xf32>
    %c2 = arith.constant 2 : index
    %c0_13 = arith.constant 0 : index
    %c0_14 = arith.constant 0 : index
    %20 = vector.load %arg3[%c2, %c0_13, %c0_14] : memref<7x176x128xbf16, #tpu.memory_space<vmem>>, vector<1x176x128xbf16>
    %21 = vector.shape_cast %20 : vector<1x176x128xbf16> to vector<176x128xbf16>
    %cst_15 = arith.constant dense<0.000000e+00> : vector<22x128xf32>
    %22 = tpu.matmul %1, %21, %cst_15 {dimension_numbers = #tpu.dot_dimension_numbers<[1], [0], [0], [1], [0, 0, 1, 1], [], []>} : vector<22x176xbf16>, vector<176x128xbf16>, vector<22x128xf32> -> vector<22x128xf32>
    %23 = vector.extract_strided_slice %22 {offsets = [1, 0], sizes = [8, 128], strides = [1, 1]} : vector<22x128xf32> to vector<8x128xf32>
    %24 = arith.addf %17, %23 : vector<8x128xf32>
    %25 = vector.extract_strided_slice %22 {offsets = [12, 0], sizes = [8, 128], strides = [1, 1]} : vector<22x128xf32> to vector<8x128xf32>
    %26 = arith.addf %19, %25 : vector<8x128xf32>
    %c3 = arith.constant 3 : index
    %c0_16 = arith.constant 0 : index
    %c0_17 = arith.constant 0 : index
    %27 = vector.load %arg3[%c3, %c0_16, %c0_17] : memref<7x176x128xbf16, #tpu.memory_space<vmem>>, vector<1x176x128xbf16>
    %28 = vector.shape_cast %27 : vector<1x176x128xbf16> to vector<176x128xbf16>
    %cst_18 = arith.constant dense<0.000000e+00> : vector<22x128xf32>
    %29 = tpu.matmul %3, %28, %cst_18 {dimension_numbers = #tpu.dot_dimension_numbers<[1], [0], [0], [1], [0, 0, 1, 1], [], []>} : vector<22x176xbf16>, vector<176x128xbf16>, vector<22x128xf32> -> vector<22x128xf32>
    %30 = vector.extract_strided_slice %29 {offsets = [1, 0], sizes = [8, 128], strides = [1, 1]} : vector<22x128xf32> to vector<8x128xf32>
    %31 = arith.addf %24, %30 : vector<8x128xf32>
    %32 = vector.extract_strided_slice %29 {offsets = [12, 0], sizes = [8, 128], strides = [1, 1]} : vector<22x128xf32> to vector<8x128xf32>
    %33 = arith.addf %26, %32 : vector<8x128xf32>
    %c4 = arith.constant 4 : index
    %c0_19 = arith.constant 0 : index
    %c0_20 = arith.constant 0 : index
    %34 = vector.load %arg3[%c4, %c0_19, %c0_20] : memref<7x176x128xbf16, #tpu.memory_space<vmem>>, vector<1x176x128xbf16>
    %35 = vector.shape_cast %34 : vector<1x176x128xbf16> to vector<176x128xbf16>
    %cst_21 = arith.constant dense<0.000000e+00> : vector<22x128xf32>
    %36 = tpu.matmul %1, %35, %cst_21 {dimension_numbers = #tpu.dot_dimension_numbers<[1], [0], [0], [1], [0, 0, 1, 1], [], []>} : vector<22x176xbf16>, vector<176x128xbf16>, vector<22x128xf32> -> vector<22x128xf32>
    %37 = vector.extract_strided_slice %36 {offsets = [2, 0], sizes = [8, 128], strides = [1, 1]} : vector<22x128xf32> to vector<8x128xf32>
    %38 = arith.addf %31, %37 : vector<8x128xf32>
    %39 = vector.extract_strided_slice %36 {offsets = [13, 0], sizes = [8, 128], strides = [1, 1]} : vector<22x128xf32> to vector<8x128xf32>
    %40 = arith.addf %33, %39 : vector<8x128xf32>
    %c5 = arith.constant 5 : index
    %c0_22 = arith.constant 0 : index
    %c0_23 = arith.constant 0 : index
    %41 = vector.load %arg3[%c5, %c0_22, %c0_23] : memref<7x176x128xbf16, #tpu.memory_space<vmem>>, vector<1x176x128xbf16>
    %42 = vector.shape_cast %41 : vector<1x176x128xbf16> to vector<176x128xbf16>
    %cst_24 = arith.constant dense<0.000000e+00> : vector<22x128xf32>
    %43 = tpu.matmul %3, %42, %cst_24 {dimension_numbers = #tpu.dot_dimension_numbers<[1], [0], [0], [1], [0, 0, 1, 1], [], []>} : vector<22x176xbf16>, vector<176x128xbf16>, vector<22x128xf32> -> vector<22x128xf32>
    %44 = vector.extract_strided_slice %43 {offsets = [2, 0], sizes = [8, 128], strides = [1, 1]} : vector<22x128xf32> to vector<8x128xf32>
    %45 = arith.addf %38, %44 : vector<8x128xf32>
    %46 = vector.extract_strided_slice %43 {offsets = [13, 0], sizes = [8, 128], strides = [1, 1]} : vector<22x128xf32> to vector<8x128xf32>
    %47 = arith.addf %40, %46 : vector<8x128xf32>
    %c6 = arith.constant 6 : index
    %c0_25 = arith.constant 0 : index
    %c0_26 = arith.constant 0 : index
    %48 = vector.load %arg3[%c6, %c0_25, %c0_26] : memref<7x176x128xbf16, #tpu.memory_space<vmem>>, vector<1x176x128xbf16>
    %49 = vector.shape_cast %48 : vector<1x176x128xbf16> to vector<176x128xbf16>
    %cst_27 = arith.constant dense<0.000000e+00> : vector<22x128xf32>
    %50 = tpu.matmul %1, %49, %cst_27 {dimension_numbers = #tpu.dot_dimension_numbers<[1], [0], [0], [1], [0, 0, 1, 1], [], []>} : vector<22x176xbf16>, vector<176x128xbf16>, vector<22x128xf32> -> vector<22x128xf32>
    %51 = vector.extract_strided_slice %50 {offsets = [3, 0], sizes = [8, 128], strides = [1, 1]} : vector<22x128xf32> to vector<8x128xf32>
    %52 = arith.addf %45, %51 : vector<8x128xf32>
    %53 = vector.extract_strided_slice %50 {offsets = [14, 0], sizes = [8, 128], strides = [1, 1]} : vector<22x128xf32> to vector<8x128xf32>
    %54 = arith.addf %47, %53 : vector<8x128xf32>
    %55 = tpu.concatenate %52, %54 in 0 : vector<8x128xf32>, vector<8x128xf32> -> vector<16x128xf32>
    %c0_28 = arith.constant 0 : index
    %c0_29 = arith.constant 0 : index
    %56 = vector.load %arg4[%c0_28, %c0_29] : memref<1x128xf32, #tpu.memory_space<vmem>>, vector<1x128xf32>
    %57 = vector.broadcast %56 : vector<1x128xf32> to vector<16x128xf32>
    %58 = arith.addf %55, %57 : vector<16x128xf32>
    %cst_30 = arith.constant 0.000000e+00 : f32
    %59 = vector.broadcast %cst_30 : f32 to vector<16x128xf32>
    %60 = arith.maximumf %58, %59 : vector<16x128xf32>
    %c0_31 = arith.constant 0 : index
    %c0_32 = arith.constant 0 : index
    %c0_33 = arith.constant 0 : index
    %61 = vector.load %arg5[%c0_31, %c0_32, %c0_33] : memref<1x16x128xf32, #tpu.memory_space<vmem>>, vector<1x16x128xf32>
    %62 = vector.shape_cast %61 : vector<1x16x128xf32> to vector<16x128xf32>
    %63 = vector.shape_cast %60 : vector<16x128xf32> to vector<1x16x128xf32>
    tpu.vector_store %arg5[%c0_31, %c0_32, %c0_33], %63 {strides = array<i32>} : memref<1x16x128xf32, #tpu.memory_space<vmem>>, vector<1x16x128xf32>,
    return
  }
  func.func @transform_0(%arg0: i32) -> (i32, i32, i32) {
    %c0_i32 = arith.constant 0 : i32
    %c0_i32_0 = arith.constant 0 : i32
    %c0_i32_1 = arith.constant 0 : i32
    return %arg0, %c0_i32, %c0_i32_0 : i32, i32, i32
  }
  func.func @transform_1(%arg0: i32) -> (i32, i32, i32) {
    %c0_i32 = arith.constant 0 : i32
    %c0_i32_0 = arith.constant 0 : i32
    %c0_i32_1 = arith.constant 0 : i32
    return %arg0, %c0_i32, %c0_i32_0 : i32, i32, i32
  }
  func.func @transform_2(%arg0: i32) -> (i32, i32, i32) {
    %c0_i32 = arith.constant 0 : i32
    %c0_i32_0 = arith.constant 0 : i32
    %c0_i32_1 = arith.constant 0 : i32
    %c0_i32_2 = arith.constant 0 : i32
    return %c0_i32, %c0_i32_0, %c0_i32_1 : i32, i32, i32
  }
  func.func @transform_3(%arg0: i32) -> (i32, i32) {
    %c0_i32 = arith.constant 0 : i32
    %c0_i32_0 = arith.constant 0 : i32
    %c0_i32_1 = arith.constant 0 : i32
    return %c0_i32, %c0_i32_0 : i32, i32
  }
  func.func @transform_4(%arg0: i32) -> (i32, i32, i32) {
    %c0_i32 = arith.constant 0 : i32
    %c0_i32_0 = arith.constant 0 : i32
    %c0_i32_1 = arith.constant 0 : i32
    return %arg0, %c0_i32, %c0_i32_0 : i32, i32, i32
  }
}

</mosaic_0001>

<llo_original>
// kernel: tile.8
$region0: #{tile.8}
  #allocation0 [shape = 's32[1]{0}', space=sflag, size = 0x4, scoped, tag = 'scoped memory for tile.8']
  %s0 = inlined_call_operand.vmem [shape: f32[8], index: 0, kind: input, shape index: {}]
  %s1 = inlined_call_operand.vmem [shape: f32[16,8], index: 1, kind: output, shape index: {}]
  // Predicated region
  $region2: #{tile.8} parent=0 // pred_check
    _
  $region3: #{tile.8} parent=0 // pred_check_branch
    %3 = sbr.rel (0) target = $region5
  $region4: #{tile.8} parent=0 // pred_region
    _
  $region5: #{tile.8} parent=0 // pred_fallthru
    _
  %v4 = vld [vmem:[%s0] ss:$0 sm:$0xff]
  %5 = vst [vmem:[%s1] sm:$0xff] %v4
  %s6 = scalar_lea.vmem %s1, 8
  %7 = vst [vmem:[%s6] sm:$0xff] %v4

// kernel: tile.9
$region0: #{tile.9}
  %s0 = inlined_call_operand.vmem [shape: f32[16,8], index: 0, kind: input, shape index: {}]
  %s1 = inlined_call_operand.vmem [shape: f32[1,128], index: 1, kind: output, shape index: {}]
  $region1: #{tile.9} parent=0
    #allocation0 [shape = 'u8[4096]{0}', space=vmem, size = 0x1000, scoped, tag = 'scoped mem for output reshape']
    %v2 = vld [vmem:[%s0] sm:$0x1]
    %vm3 = vcmask 64512
    %4 = vst.msk [vmem:[#allocation0] sm:$0x1] %vm3, %v2
    %s5 = scalar_lea.vmem %s0, 15
    %v6 = vld [vmem:[%s5] sm:$0x1]
    %7 = vrot.lane.b32.xlu0 %v6, 120
    %v8 = vpop.permute.xlu0 %7
    %vm9 = vcmask 1048512
    %10 = vst.msk [vmem:[#allocation0] sm:$0x1] %vm9, %v8
    %s11 = scalar_lea.vmem %s0, 14
    %v12 = vld [vmem:[%s11] sm:$0x1]
    %13 = vrot.lane.b32.xlu0 %v12, 112
    %v14 = vpop.permute.xlu0 %13
    %vm15 = vcmask 982912
    %16 = vst.msk [vmem:[#allocation0] sm:$0x1] %vm15, %v14
    %s17 = scalar_lea.vmem %s0, 13
    %v18 = vld [vmem:[%s17] sm:$0x1]
    %19 = vrot.lane.b32.xlu0 %v18, 104
    %v20 = vpop.permute.xlu0 %19
    %vm21 = vcmask 917312
    %22 = vst.msk [vmem:[#allocation0] sm:$0x1] %vm21, %v20
    %s23 = scalar_lea.vmem %s0, 12
    %v24 = vld [vmem:[%s23] sm:$0x1]
    %25 = vrot.lane.b32.xlu0 %v24, 96
    %v26 = vpop.permute.xlu0 %25
    %vm27 = vcmask 851712
    %28 = vst.msk [vmem:[#allocation0] sm:$0x1] %vm27, %v26
    %s29 = scalar_lea.vmem %s0, 11
    %v30 = vld [vmem:[%s29] sm:$0x1]
    %31 = vrot.lane.b32.xlu0 %v30, 88
    %v32 = vpop.permute.xlu0 %31
    %vm33 = vcmask 786112
    %34 = vst.msk [vmem:[#allocation0] sm:$0x1] %vm33, %v32
    %s35 = scalar_lea.vmem %s0, 10
    %v36 = vld [vmem:[%s35] sm:$0x1]
    %37 = vrot.lane.b32.xlu0 %v36, 80
    %v38 = vpop.permute.xlu0 %37
    %vm39 = vcmask 720512
    %40 = vst.msk [vmem:[#allocation0] sm:$0x1] %vm39, %v38
    %s41 = scalar_lea.vmem %s0, 9
    %v42 = vld [vmem:[%s41] sm:$0x1]
    %43 = vrot.lane.b32.xlu0 %v42, 72
    %v44 = vpop.permute.xlu0 %43
    %vm45 = vcmask 654912
    %46 = vst.msk [vmem:[#allocation0] sm:$0x1] %vm45, %v44
    %s47 = scalar_lea.vmem %s0, 8
    %v48 = vld [vmem:[%s47] sm:$0x1]
    %49 = vrot.lane.b32.xlu0 %v48, 64
    %v50 = vpop.permute.xlu0 %49
    %vm51 = vcmask 589312
    %52 = vst.msk [vmem:[#allocation0] sm:$0x1] %vm51, %v50
    %s53 = scalar_lea.vmem %s0, 7
    %v54 = vld [vmem:[%s53] sm:$0x1]
    %55 = vrot.lane.b32.xlu0 %v54, 56
    %v56 = vpop.permute.xlu0 %55
    %vm57 = vcmask 523712
    %58 = vst.msk [vmem:[#allocation0] sm:$0x1] %vm57, %v56
    %s59 = scalar_lea.vmem %s0, 6
    %v60 = vld [vmem:[%s59] sm:$0x1]
    %61 = vrot.lane.b32.xlu0 %v60, 48
    %v62 = vpop.permute.xlu0 %61
    %vm63 = vcmask 458112
    %64 = vst.msk [vmem:[#allocation0] sm:$0x1] %vm63, %v62
    %s65 = scalar_lea.vmem %s0, 5
    %v66 = vld [vmem:[%s65] sm:$0x1]
    %67 = vrot.lane.b32.xlu0 %v66, 40
    %v68 = vpop.permute.xlu0 %67
    %vm69 = vcmask 392512
    %70 = vst.msk [vmem:[#allocation0] sm:$0x1] %vm69, %v68
    %s71 = scalar_lea.vmem %s0, 4
    %v72 = vld [vmem:[%s71] sm:$0x1]
    %73 = vrot.lane.b32.xlu0 %v72, 32
    %v74 = vpop.permute.xlu0 %73
    %vm75 = vcmask 326912
    %76 = vst.msk [vmem:[#allocation0] sm:$0x1] %vm75, %v74
    %s77 = scalar_lea.vmem %s0, 3
    %v78 = vld [vmem:[%s77] sm:$0x1]
    %79 = vrot.lane.b32.xlu0 %v78, 24
    %v80 = vpop.permute.xlu0 %79
    %vm81 = vcmask 261312
    %82 = vst.msk [vmem:[#allocation0] sm:$0x1] %vm81, %v80
    %s83 = scalar_lea.vmem %s0, 2
    %v84 = vld [vmem:[%s83] sm:$0x1]
    %85 = vrot.lane.b32.xlu0 %v84, 16
    %v86 = vpop.permute.xlu0 %85
    %vm87 = vcmask 195712
    %88 = vst.msk [vmem:[#allocation0] sm:$0x1] %vm87, %v86
    %s89 = scalar_lea.vmem %s0, 1
    %v90 = vld [vmem:[%s89] sm:$0x1]
    %91 = vrot.lane.b32.xlu0 %v90, 8
    %v92 = vpop.permute.xlu0 %91
    %vm93 = vcmask 130112
    %94 = vst.msk [vmem:[#allocation0] sm:$0x1] %vm93, %v92
    %s96 = sshllo.u32 0, 1
    %v98 = vld [vmem:[#allocation0] sm:%s96]
    %s99 = sshllo.u32 0, 1
    %100 = vst [vmem:[%s1] sm:%s99] %v98

// kernel: base3d_block_forward.1
$region0: #{base3d_block_forward.1}
  #allocation0 [shape = 'u32[]', space=smem, size = 0x4, offset = 0x4, fixed_abs, tag = 'smem constant byte address 0x4 - core index']
  #allocation1 [shape = 'u32[144,128]{1,0:T(1,128)}', space=vmem, size = 0x12000, scoped, tag = 'internal scratch']
  %s0 = inlined_call_operand.vmem [shape: bf16[2,22,176], index: 0, kind: input, shape index: {}]
  %s1 = inlined_call_operand.vmem [shape: bf16[2,22,176], index: 1, kind: input, shape index: {}]
  %s2 = inlined_call_operand.vmem [shape: bf16[7,176,128], index: 2, kind: input, shape index: {}]
  %s3 = inlined_call_operand.vmem [shape: f32[1,128], index: 3, kind: input, shape index: {}]
  %s4 = inlined_call_operand.vmem [shape: f32[2,16,128], index: 4, kind: output, shape index: {}]
  %s5 = sld [smem:[#allocation0]]
  $region49: #{base3d_block_forward.1} parent=0
    _
  %s7 = ssub.s32 1, %s5
  %s8 = scalar_select 0, %s7, %s5
  loop: start=0, step=1, limit=4
  $region2: #{base3d_block_forward.1} parent=0 // loop_pre_header
    _
  $region3: #{base3d_block_forward.1} parent=0 // loop_header
    %s10 = sphi 0, %s14
    %p11 = scmp.ge.s32.totalorder %s10, 4
    %s20 = sphi 0, %s22
    %s23 = sphi 0, %s20
    %s24 = sphi 0, %s23
    %s40 = sphi 0, %s24
    %s46 = sphi 0, %s48
    %s49 = sphi 0, %s46
    %s50 = sphi 0, %s49
    %s66 = sphi 0, %s50
    %s70 = sphi 0, %s70
    %s72 = sphi 0, %s70
    %s73 = sphi 0, %s72
    %s87 = sphi 0, %s73
    %s91 = sphi 0, %s91
    %s93 = sphi 0, %s91
    %s94 = sphi 0, %s93
    %s108 = sphi 0, %s94
    %s114 = sphi 0, %s116
    %s117 = sphi 0, %s114
    %s118 = sphi 0, %s117
    %s134 = sphi 0, %s118
  $region4: #{base3d_block_forward.1} parent=0 // loop_header_branch
    %13 = sbr.rel (%p11) target = $region8
  $region5: #{base3d_block_forward.1} parent=0 // loop_body
    %s15 = ssub.s32 %s10, 1
    %s16 = ssub.s32 %s10, 2
    %s17 = sadd.s32 %s10, 1
    %s18 = ssub.s32 %s10, %s17
    %p19 = scmp.eq.s32.totalorder %s18, 0
    %s21 = sadd.s32 %s20, 1
    %s22 = scalar_select %p19, %s20, %s21
    %p25 = pneg %p19
    %p26 = scmp.eq.s32.totalorder %s10, 1
    %p27 = por %p25, %p26
    %p28 = scmp.ne.s32.totalorder %s20, %s23
    %p29 = scmp.eq.s32.totalorder %s10, 0
    %p30 = por %p28, %p29
    %p31 = scmp.ne.s32.totalorder %s20, %s23
    %p32 = scmp.eq.s32.totalorder %s15, 1
    %p33 = por %p31, %p32
    %p34 = scmp.ne.s32.totalorder %s23, %s24
    %p35 = scmp.eq.s32.totalorder %s15, 0
    %p36 = por %p34, %p35
    %p37 = scmp.ne.s32.totalorder %s23, %s24
    %p38 = scmp.eq.s32.totalorder %s16, 1
    %p39 = por %p37, %p38
    %p41 = scmp.ne.s32.totalorder %s24, %s40
    %p42 = scmp.eq.s32.totalorder %s16, 0
    %p43 = por %p41, %p42
    %s44 = ssub.s32 %s10, %s17
    %p45 = scmp.eq.s32.totalorder %s44, 0
    %s47 = sadd.s32 %s46, 1
    %s48 = scalar_select %p45, %s46, %s47
    %p51 = pneg %p45
    %p52 = scmp.eq.s32.totalorder %s10, 1
    %p53 = por %p51, %p52
    %p54 = scmp.ne.s32.totalorder %s46, %s49
    %p55 = scmp.eq.s32.totalorder %s10, 0
    %p56 = por %p54, %p55
    %p57 = scmp.ne.s32.totalorder %s46, %s49
    %p58 = scmp.eq.s32.totalorder %s15, 1
    %p59 = por %p57, %p58
    %p60 = scmp.ne.s32.totalorder %s49, %s50
    %p61 = scmp.eq.s32.totalorder %s15, 0
    %p62 = por %p60, %p61
    %p63 = scmp.ne.s32.totalorder %s49, %s50
    %p64 = scmp.eq.s32.totalorder %s16, 1
    %p65 = por %p63, %p64
    %p67 = scmp.ne.s32.totalorder %s50, %s66
    %p68 = scmp.eq.s32.totalorder %s16, 0
    %p69 = por %p67, %p68
    %s71 = sadd.s32 %s70, 1
    %p74 = scmp.eq.s32.totalorder %s10, 1
    %p75 = scmp.ne.s32.totalorder %s70, %s72
    %p76 = scmp.eq.s32.totalorder %s10, 0
    %p77 = por %p75, %p76
    %p78 = scmp.ne.s32.totalorder %s70, %s72
    %p79 = scmp.eq.s32.totalorder %s15, 1
    %p80 = por %p78, %p79
    %p81 = scmp.ne.s32.totalorder %s72, %s73
    %p82 = scmp.eq.s32.totalorder %s15, 0
    %p83 = por %p81, %p82
    %p84 = scmp.ne.s32.totalorder %s72, %s73
    %p85 = scmp.eq.s32.totalorder %s16, 1
    %p86 = por %p84, %p85
    %p88 = scmp.ne.s32.totalorder %s73, %s87
    %p89 = scmp.eq.s32.totalorder %s16, 0
    %p90 = por %p88, %p89
    %s92 = sadd.s32 %s91, 1
    %p95 = scmp.eq.s32.totalorder %s10, 1
    %p96 = scmp.ne.s32.totalorder %s91, %s93
    %p97 = scmp.eq.s32.totalorder %s10, 0
    %p98 = por %p96, %p97
    %p99 = scmp.ne.s32.totalorder %s91, %s93
    %p100 = scmp.eq.s32.totalorder %s15, 1
    %p101 = por %p99, %p100
    %p102 = scmp.ne.s32.totalorder %s93, %s94
    %p103 = scmp.eq.s32.totalorder %s15, 0
    %p104 = por %p102, %p103
    %p105 = scmp.ne.s32.totalorder %s93, %s94
    %p106 = scmp.eq.s32.totalorder %s16, 1
    %p107 = por %p105, %p106
    %p109 = scmp.ne.s32.totalorder %s94, %s108
    %p110 = scmp.eq.s32.totalorder %s16, 0
    %p111 = por %p109, %p110
    %s112 = ssub.s32 %s10, %s17
    %p113 = scmp.eq.s32.totalorder %s112, 0
    %s115 = sadd.s32 %s114, 1
    %s116 = scalar_select %p113, %s114, %s115
    %p119 = pneg %p113
    %p120 = scmp.eq.s32.totalorder %s10, 1
    %p121 = por %p119, %p120
    %p122 = scmp.ne.s32.totalorder %s114, %s117
    %p123 = scmp.eq.s32.totalorder %s10, 0
    %p124 = por %p122, %p123
    %p125 = scmp.ne.s32.totalorder %s114, %s117
    %p126 = scmp.eq.s32.totalorder %s15, 1
    %p127 = por %p125, %p126
    %p128 = scmp.ne.s32.totalorder %s117, %s118
    %p129 = scmp.eq.s32.totalorder %s15, 0
    %p130 = por %p128, %p129
    %p131 = scmp.ne.s32.totalorder %s117, %s118
    %p132 = scmp.eq.s32.totalorder %s16, 1
    %p133 = por %p131, %p132
    %p135 = scmp.ne.s32.totalorder %s118, %s134
    %p136 = scmp.eq.s32.totalorder %s16, 0
    %p137 = por %p135, %p136
    %p138 = scmp.le.s32.totalorder 1, %s10
    %p139 = scmp.lt.s32.totalorder %s10, 3
    %p140 = pnand %p138, %p139
    %p141 = pneg %p140
    // Predicated region
    $region9: #{base3d_block_forward.1} parent=5 // pred_check
      _
    $region10: #{base3d_block_forward.1} parent=5 // pred_check_branch
      %143 = sbr.rel (%p140) target = $region12
    $region11: #{base3d_block_forward.1} parent=5 // pred_region
      %s144 = ssub.s32 %s10, 1
      // Predicated region
      $region13: #{base3d_block_forward.1} parent=11 // pred_check
        %p145 = pneg %p83
      $region14: #{base3d_block_forward.1} parent=11 // pred_check_branch
        %147 = sbr.rel (%p145) target = $region16
      $region15: #{base3d_block_forward.1} parent=11 // pred_region
        _
      $region16: #{base3d_block_forward.1} parent=11 // pred_fallthru
        _
      // Predicated region
      $region17: #{base3d_block_forward.1} parent=11 // pred_check
        %p148 = pneg %p104
      $region18: #{base3d_block_forward.1} parent=11 // pred_check_branch
        %150 = sbr.rel (%p148) target = $region20
      $region19: #{base3d_block_forward.1} parent=11 // pred_region
        _
      $region20: #{base3d_block_forward.1} parent=11 // pred_fallthru
        _
    $region12: #{base3d_block_forward.1} parent=5 // pred_fallthru
      _
    %p151 = scmp.lt.s32.totalorder %s10, 2
    // Predicated region
    $region21: #{base3d_block_forward.1} parent=5 // pred_check
      %p152 = pneg %p151
    $region22: #{base3d_block_forward.1} parent=5 // pred_check_branch
      %154 = sbr.rel (%p152) target = $region24
    $region23: #{base3d_block_forward.1} parent=5 // pred_region
      // Predicated region
      $region25: #{base3d_block_forward.1} parent=23 // pred_check
        %p155 = pneg %p30
      $region26: #{base3d_block_forward.1} parent=23 // pred_check_branch
        %157 = sbr.rel (%p155) target = $region28
      $region27: #{base3d_block_forward.1} parent=23 // pred_region
        %p158 = scmp.lt.s32.totalorder %s10, 1
        %s159 = scalar_select %p158, %s10, 1
        %s160 = smul.addr %s159, 6
        %s161 = smul.addr %s160, 4
        %s162 = scalar_lea.vmem %s0, %s161
      $region28: #{base3d_block_forward.1} parent=23 // pred_fallthru
        _
      // Predicated region
      $region29: #{base3d_block_forward.1} parent=23 // pred_check
        %p163 = pneg %p56
      $region30: #{base3d_block_forward.1} parent=23 // pred_check_branch
        %165 = sbr.rel (%p163) target = $region32
      $region31: #{base3d_block_forward.1} parent=23 // pred_region
        %p166 = scmp.lt.s32.totalorder %s10, 1
        %s167 = scalar_select %p166, %s10, 1
        %s168 = smul.addr %s167, 6
        %s169 = smul.addr %s168, 4
        %s170 = scalar_lea.vmem %s1, %s169
      $region32: #{base3d_block_forward.1} parent=23 // pred_fallthru
        _
    $region24: #{base3d_block_forward.1} parent=5 // pred_fallthru
      _
    %p171 = scmp.le.s32.totalorder 1, %s10
    %p172 = scmp.lt.s32.totalorder %s10, 3
    %p173 = pnand %p171, %p172
    %p174 = pneg %p173
    // Predicated region
    $region33: #{base3d_block_forward.1} parent=5 // pred_check
      _
    $region34: #{base3d_block_forward.1} parent=5 // pred_check_branch
      %176 = sbr.rel (%p173) target = $region36
    $region35: #{base3d_block_forward.1} parent=5 // pred_region
      %s177 = ssub.s32 %s10, 1
      %p178 = scmp.lt.s32.totalorder %s15, 1
      %s179 = scalar_select %p178, %s15, 1
      %s180 = smul.addr %s179, 6
      %s181 = smul.addr %s180, 4
      %s182 = scalar_lea.vmem %s0, %s181
      %p183 = pneg %p36
      %p184 = pneg %p33
      %p185 = scmp.lt.s32.totalorder %s15, 1
      %s186 = scalar_select %p185, %s15, 1
      %s187 = smul.addr %s186, 6
      %s188 = smul.addr %s187, 4
      %s189 = scalar_lea.vmem %s1, %s188
      %p190 = pneg %p62
      %p191 = pneg %p59
      %p192 = pneg %p83
      %p193 = pneg %p80
      %p194 = pneg %p104
      %p195 = pneg %p101
      %p196 = pneg %p130
      %p197 = pneg %p127
      %p198 = scmp.lt.s32.totalorder %s15, 1
      %s199 = scalar_select %p198, %s15, 1
      %s200 = smul.addr %s199, 2
      %s201 = smul.addr %s200, 8
      %s202 = scalar_lea.vmem %s4, %s201
      %p203 = scmp.lt.s32.totalorder %s15, 1
      %s204 = scalar_select %p203, %s15, 1
      %s205 = smul.addr %s204, 6
      %s206 = smul.addr %s205, 4
      %s207 = scalar_lea.vmem %s0, %s206
      %p208 = scmp.lt.s32.totalorder %s15, 1
      %s209 = scalar_select %p208, %s15, 1
      %s210 = smul.addr %s209, 6
      %s211 = smul.addr %s210, 4
      %s212 = scalar_lea.vmem %s1, %s211
      %p213 = scmp.lt.s32.totalorder %s15, 1
      %s214 = scalar_select %p213, %s15, 1
      %s215 = smul.addr %s214, 2
      %s216 = smul.addr %s215, 8
      %s217 = scalar_lea.vmem %s4, %s216
      %v219 = vld [vmem:[%s207] sm:$0xff]
      %v220 = vld [vmem:[%s207 + $0x8] sm:$0xff]
      %v221 = vld [vmem:[%s207 + $0x10] sm:$0x77]
      %v222 = vld [vmem:[%s212] sm:$0xff]
      %v223 = vld [vmem:[%s212 + $0x8] sm:$0xff]
      %v224 = vld [vmem:[%s212 + $0x10] sm:$0x77]
      %v225 = vld [vmem:[%s2] sm:$0xf]
      %v226 = vld [vmem:[%s2 + $0x4] sm:$0xf]
      %v227 = vld [vmem:[%s2 + $0x8] sm:$0xf]
      %v228 = vld [vmem:[%s2 + $0xc] sm:$0xf]
      %v229 = vld [vmem:[%s2 + $0x10] sm:$0xf]
      %v230 = vld [vmem:[%s2 + $0x14] sm:$0xf]
      %v231 = vld [vmem:[%s2 + $0x18] sm:$0xf]
      %v232 = vld [vmem:[%s2 + $0x1c] sm:$0xf]
      %v233 = vld [vmem:[%s2 + $0x20] sm:$0xf]
      %v234 = vld [vmem:[%s2 + $0x24] sm:$0xf]
      %v235 = vld [vmem:[%s2 + $0x28] sm:$0xf]
      %v236 = vld [vmem:[%s2 + $0x2c] sm:$0xf]
      %v237 = vld [vmem:[%s2 + $0x30] sm:$0xf]
      %v238 = vld [vmem:[%s2 + $0x34] sm:$0xf]
      %v239 = vld [vmem:[%s2 + $0x38] sm:$0xf]
      %v240 = vld [vmem:[%s2 + $0x3c] sm:$0xf]
      %v241 = vld [vmem:[%s2 + $0x40] sm:$0xf]
      %v242 = vld [vmem:[%s2 + $0x44] sm:$0xf]
      %v243 = vld [vmem:[%s2 + $0x48] sm:$0xf]
      %v244 = vld [vmem:[%s2 + $0x4c] sm:$0xf]
      %v245 = vld [vmem:[%s2 + $0x50] sm:$0xf]
      %v246 = vld [vmem:[%s2 + $0x54] sm:$0xf]
      %v250 = vunpack.c.l.b16 %v219
      %v251 = vunpack.c.h.b16 %v219
      %v252 = vunpack.c.l.b16 %v220
      %v253 = vunpack.c.h.b16 %v220
      %v254 = vunpack.c.l.b16 %v221
      %v255 = vunpack.c.h.b16 %v221
      %v256 = vpack.c.b16 %v252, %v250
      %v257 = vpack.c.b16 %v253, %v251
      %v258 = vpack.c.b16 %v254, %v254
      %v259 = vpack.c.b16 %v255, %v255
      %v284 = vunpack.c.l.b16 %v225
      %v285 = vunpack.c.l.b16 %v226
      %v286 = vunpack.c.l.b16 %v227
      %v287 = vunpack.c.l.b16 %v228
      %v288 = vunpack.c.l.b16 %v229
      %v289 = vunpack.c.l.b16 %v230
      %v290 = vunpack.c.l.b16 %v231
      %v291 = vunpack.c.l.b16 %v232
      %v292 = vunpack.c.l.b16 %v233
      %v293 = vunpack.c.l.b16 %v234
      %v294 = vunpack.c.l.b16 %v235
      %v295 = vunpack.c.l.b16 %v236
      %v296 = vunpack.c.l.b16 %v237
      %v297 = vunpack.c.l.b16 %v238
      %v298 = vunpack.c.l.b16 %v239
      %v299 = vunpack.c.l.b16 %v240
      %v300 = vunpack.c.l.b16 %v241
      %v301 = vunpack.c.l.b16 %v242
      %v302 = vunpack.c.l.b16 %v243
      %v303 = vunpack.c.l.b16 %v244
      %v304 = vunpack.c.l.b16 %v245
      %v305 = vunpack.c.l.b16 %v246
      %v306 = vpack.c.b16 %v285, %v284
      %v307 = vpack.c.b16 %v287, %v286
      %v308 = vpack.c.b16 %v289, %v288
      %v309 = vpack.c.b16 %v291, %v290
      %v310 = vpack.c.b16 %v293, %v292
      %v311 = vpack.c.b16 %v295, %v294
      %v312 = vpack.c.b16 %v297, %v296
      %v313 = vpack.c.b16 %v299, %v298
      %v314 = vpack.c.b16 %v301, %v300
      %v315 = vpack.c.b16 %v303, %v302
      %v316 = vpack.c.b16 %v305, %v304
      %vm328 = vcmask 392192
      %v330 = vsel %vm328, %v257, 0
      %v333 = vsel %vm328, %v259, 0
      %335 = vmatprep.subr.bf16.mxu0 0
      %336 = vmatpush1.bf16.msra.mxu0 %v306
      %337 = vmatprep.subr.bf16.mxu0 0
      %338 = vmatpush1.bf16.msra.mxu0 %v307
      %339 = vmatprep.subr.bf16.mxu0 0
      %340 = vmatpush1.bf16.msra.mxu0 %v308
      %341 = vmatprep.subr.bf16.mxu0 0
      %342 = vmatpush1.bf16.msra.mxu0 %v309
      %343 = vmatprep.subr.bf16.mxu0 0
      %344 = vmatpush1.bf16.msra.mxu0 %v310
      %345 = vmatprep.subr.bf16.mxu0 0
      %346 = vmatpush1.bf16.msra.mxu0 %v311
      %347 = vmatprep.subr.bf16.mxu0 0
      %348 = vmatpush1.bf16.msra.mxu0 %v312
      %349 = vmatprep.subr.bf16.mxu0 0
      %350 = vmatpush1.bf16.msra.mxu0 %v313
      %351 = vmatprep.subr.bf16.mxu0 0
      %352 = vmatpush1.bf16.msra.mxu0 %v314
      %353 = vmatprep.subr.bf16.mxu0 0
      %354 = vmatpush1.bf16.msra.mxu0 %v315
      %355 = vmatprep.subr.bf16.mxu0 0
      %356 = vmatpush1.bf16.msra.mxu0 %v316
      %357 = vmatprep.subr.bf16.mxu0 0
      %358 = vmatpush1.bf16.msra.mxu0 0
      %359 = vmatprep.subr.bf16.mxu0 0
      %360 = vmatpush1.bf16.msra.mxu0 0
      %361 = vmatprep.subr.bf16.mxu0 0
      %362 = vmatpush1.bf16.msra.mxu0 0
      %363 = vmatprep.subr.bf16.mxu0 0
      %364 = vmatpush1.bf16.msra.mxu0 0
      %365 = vmatprep.subr.bf16.mxu0 0
      %366 = vmatpush1.bf16.msra.mxu0 0
      %367 = vmatprep.mubr.bf16.mxu0 %v330
      %368 = vmatmul.mubr.bf16.gmra.mrb[0].mxu0 %v256
      %v369 = vpop.f32.mrb[0].mxu0
      %v370 = vadd.f32 0.0, %v369
      %v371 = vpop.f32.mrb[0].mxu0
      %v372 = vpop.f32.mrb[0].mxu0
      %v373 = vadd.f32 0.0, %v372
      %v374 = vpop.f32.mrb[0].mxu0
      %375 = vmatprep.mubr.bf16.mxu0 %v333
      %376 = vmatmul.mubr.bf16.gmra.mrb[0].mxu0 %v258
      %v377 = vpop.f32.mrb[0].mxu0
      %v378 = vadd.f32 0.0, %v377
      %v379 = vpop.f32.mrb[0].mxu0
      %v380 = vpop.f32.mrb[0].mxu0
      %v381 = vpop.f32.mrb[0].mxu0
      %382 = vdwg.mxu0
      %v383 = vadd.f32 %v370, 0.0
      %v384 = vadd.f32 %v373, 0.0
      %v385 = vadd.f32 %v378, 0.0
      %s386 = scalar_lea.vmem %s2, 88
      %v387 = vld [vmem:[%s386] sm:$0xf]
      %v388 = vld [vmem:[%s386 + $0x4] sm:$0xf]
      %v389 = vld [vmem:[%s386 + $0x8] sm:$0xf]
      %v390 = vld [vmem:[%s386 + $0xc] sm:$0xf]
      %v391 = vld [vmem:[%s386 + $0x10] sm:$0xf]
      %v392 = vld [vmem:[%s386 + $0x14] sm:$0xf]
      %v393 = vld [vmem:[%s386 + $0x18] sm:$0xf]
      %v394 = vld [vmem:[%s386 + $0x1c] sm:$0xf]
      %v395 = vld [vmem:[%s386 + $0x20] sm:$0xf]
      %v396 = vld [vmem:[%s386 + $0x24] sm:$0xf]
      %v397 = vld [vmem:[%s386 + $0x28] sm:$0xf]
      %v398 = vld [vmem:[%s386 + $0x2c] sm:$0xf]
      %v399 = vld [vmem:[%s386 + $0x30] sm:$0xf]
      %v400 = vld [vmem:[%s386 + $0x34] sm:$0xf]
      %v401 = vld [vmem:[%s386 + $0x38] sm:$0xf]
      %v402 = vld [vmem:[%s386 + $0x3c] sm:$0xf]
      %v403 = vld [vmem:[%s386 + $0x40] sm:$0xf]
      %v404 = vld [vmem:[%s386 + $0x44] sm:$0xf]
      %v405 = vld [vmem:[%s386 + $0x48] sm:$0xf]
      %v406 = vld [vmem:[%s386 + $0x4c] sm:$0xf]
      %v407 = vld [vmem:[%s386 + $0x50] sm:$0xf]
      %v408 = vld [vmem:[%s386 + $0x54] sm:$0xf]
      %v412 = vunpack.c.l.b16 %v222
      %v413 = vunpack.c.h.b16 %v222
      %v414 = vunpack.c.l.b16 %v223
      %v415 = vunpack.c.h.b16 %v223
      %v416 = vunpack.c.l.b16 %v224
      %v417 = vunpack.c.h.b16 %v224
      %v418 = vpack.c.b16 %v414, %v412
      %v419 = vpack.c.b16 %v415, %v413
      %v420 = vpack.c.b16 %v416, %v416
      %v421 = vpack.c.b16 %v417, %v417
      %v446 = vunpack.c.l.b16 %v387
      %v447 = vunpack.c.l.b16 %v388
      %v448 = vunpack.c.l.b16 %v389
      %v449 = vunpack.c.l.b16 %v390
      %v450 = vunpack.c.l.b16 %v391
      %v451 = vunpack.c.l.b16 %v392
      %v452 = vunpack.c.l.b16 %v393
      %v453 = vunpack.c.l.b16 %v394
      %v454 = vunpack.c.l.b16 %v395
      %v455 = vunpack.c.l.b16 %v396
      %v456 = vunpack.c.l.b16 %v397
      %v457 = vunpack.c.l.b16 %v398
      %v458 = vunpack.c.l.b16 %v399
      %v459 = vunpack.c.l.b16 %v400
      %v460 = vunpack.c.l.b16 %v401
      %v461 = vunpack.c.l.b16 %v402
      %v462 = vunpack.c.l.b16 %v403
      %v463 = vunpack.c.l.b16 %v404
      %v464 = vunpack.c.l.b16 %v405
      %v465 = vunpack.c.l.b16 %v406
      %v466 = vunpack.c.l.b16 %v407
      %v467 = vunpack.c.l.b16 %v408
      %v468 = vpack.c.b16 %v447, %v446
      %v469 = vpack.c.b16 %v449, %v448
      %v470 = vpack.c.b16 %v451, %v450
      %v471 = vpack.c.b16 %v453, %v452
      %v472 = vpack.c.b16 %v455, %v454
      %v473 = vpack.c.b16 %v457, %v456
      %v474 = vpack.c.b16 %v459, %v458
      %v475 = vpack.c.b16 %v461, %v460
      %v476 = vpack.c.b16 %v463, %v462
      %v477 = vpack.c.b16 %v465, %v464
      %v478 = vpack.c.b16 %v467, %v466
      %v491 = vsel %vm328, %v419, 0
      %v494 = vsel %vm328, %v421, 0
      %496 = vmatprep.subr.bf16.mxu0 0
      %497 = vmatpush1.bf16.msra.mxu0 %v468
      %498 = vmatprep.subr.bf16.mxu0 0
      %499 = vmatpush1.bf16.msra.mxu0 %v469
      %500 = vmatprep.subr.bf16.mxu0 0
      %501 = vmatpush1.bf16.msra.mxu0 %v470
      %502 = vmatprep.subr.bf16.mxu0 0
      %503 = vmatpush1.bf16.msra.mxu0 %v471
      %504 = vmatprep.subr.bf16.mxu0 0
      %505 = vmatpush1.bf16.msra.mxu0 %v472
      %506 = vmatprep.subr.bf16.mxu0 0
      %507 = vmatpush1.bf16.msra.mxu0 %v473
      %508 = vmatprep.subr.bf16.mxu0 0
      %509 = vmatpush1.bf16.msra.mxu0 %v474
      %510 = vmatprep.subr.bf16.mxu0 0
      %511 = vmatpush1.bf16.msra.mxu0 %v475
      %512 = vmatprep.subr.bf16.mxu0 0
      %513 = vmatpush1.bf16.msra.mxu0 %v476
      %514 = vmatprep.subr.bf16.mxu0 0
      %515 = vmatpush1.bf16.msra.mxu0 %v477
      %516 = vmatprep.subr.bf16.mxu0 0
      %517 = vmatpush1.bf16.msra.mxu0 %v478
      %518 = vmatprep.subr.bf16.mxu0 0
      %519 = vmatpush1.bf16.msra.mxu0 0
      %520 = vmatprep.subr.bf16.mxu0 0
      %521 = vmatpush1.bf16.msra.mxu0 0
      %522 = vmatprep.subr.bf16.mxu0 0
      %523 = vmatpush1.bf16.msra.mxu0 0
      %524 = vmatprep.subr.bf16.mxu0 0
      %525 = vmatpush1.bf16.msra.mxu0 0
      %526 = vmatprep.subr.bf16.mxu0 0
      %527 = vmatpush1.bf16.msra.mxu0 0
      %528 = vmatprep.mubr.bf16.mxu0 %v491
      %529 = vmatmul.mubr.bf16.gmra.mrb[0].mxu0 %v418
      %v530 = vpop.f32.mrb[0].mxu0
      %v531 = vadd.f32 0.0, %v530
      %v532 = vpop.f32.mrb[0].mxu0
      %v533 = vpop.f32.mrb[0].mxu0
      %v534 = vadd.f32 0.0, %v533
      %v535 = vpop.f32.mrb[0].mxu0
      %536 = vmatprep.mubr.bf16.mxu0 %v494
      %537 = vmatmul.mubr.bf16.gmra.mrb[0].mxu0 %v420
      %v538 = vpop.f32.mrb[0].mxu0
      %v539 = vadd.f32 0.0, %v538
      %v540 = vpop.f32.mrb[0].mxu0
      %v541 = vpop.f32.mrb[0].mxu0
      %v542 = vpop.f32.mrb[0].mxu0
      %543 = vdwg.mxu0
      %v544 = vadd.f32 %v383, %v531
      %v545 = vadd.f32 %v384, %v534
      %v546 = vadd.f32 %v385, %v539
      %s547 = scalar_lea.vmem %s2, 176
      %v548 = vld [vmem:[%s547] sm:$0xf]
      %v549 = vld [vmem:[%s547 + $0x4] sm:$0xf]
      %v550 = vld [vmem:[%s547 + $0x8] sm:$0xf]
      %v551 = vld [vmem:[%s547 + $0xc] sm:$0xf]
      %v552 = vld [vmem:[%s547 + $0x10] sm:$0xf]
      %v553 = vld [vmem:[%s547 + $0x14] sm:$0xf]
      %v554 = vld [vmem:[%s547 + $0x18] sm:$0xf]
      %v555 = vld [vmem:[%s547 + $0x1c] sm:$0xf]
      %v556 = vld [vmem:[%s547 + $0x20] sm:$0xf]
      %v557 = vld [vmem:[%s547 + $0x24] sm:$0xf]
      %v558 = vld [vmem:[%s547 + $0x28] sm:$0xf]
      %v559 = vld [vmem:[%s547 + $0x2c] sm:$0xf]
      %v560 = vld [vmem:[%s547 + $0x30] sm:$0xf]
      %v561 = vld [vmem:[%s547 + $0x34] sm:$0xf]
      %v562 = vld [vmem:[%s547 + $0x38] sm:$0xf]
      %v563 = vld [vmem:[%s547 + $0x3c] sm:$0xf]
      %v564 = vld [vmem:[%s547 + $0x40] sm:$0xf]
      %v565 = vld [vmem:[%s547 + $0x44] sm:$0xf]
      %v566 = vld [vmem:[%s547 + $0x48] sm:$0xf]
      %v567 = vld [vmem:[%s547 + $0x4c] sm:$0xf]
      %v568 = vld [vmem:[%s547 + $0x50] sm:$0xf]
      %v569 = vld [vmem:[%s547 + $0x54] sm:$0xf]
      %v592 = vunpack.c.l.b16 %v548
      %v593 = vunpack.c.l.b16 %v549
      %v594 = vunpack.c.l.b16 %v550
      %v595 = vunpack.c.l.b16 %v551
      %v596 = vunpack.c.l.b16 %v552
      %v597 = vunpack.c.l.b16 %v553
      %v598 = vunpack.c.l.b16 %v554
      %v599 = vunpack.c.l.b16 %v555
      %v600 = vunpack.c.l.b16 %v556
      %v601 = vunpack.c.l.b16 %v557
      %v602 = vunpack.c.l.b16 %v558
      %v603 = vunpack.c.l.b16 %v559
      %v604 = vunpack.c.l.b16 %v560
      %v605 = vunpack.c.l.b16 %v561
      %v606 = vunpack.c.l.b16 %v562
      %v607 = vunpack.c.l.b16 %v563
      %v608 = vunpack.c.l.b16 %v564
      %v609 = vunpack.c.l.b16 %v565
      %v610 = vunpack.c.l.b16 %v566
      %v611 = vunpack.c.l.b16 %v567
      %v612 = vunpack.c.l.b16 %v568
      %v613 = vunpack.c.l.b16 %v569
      %v614 = vpack.c.b16 %v593, %v592
      %v615 = vpack.c.b16 %v595, %v594
      %v616 = vpack.c.b16 %v597, %v596
      %v617 = vpack.c.b16 %v599, %v598
      %v618 = vpack.c.b16 %v601, %v600
      %v619 = vpack.c.b16 %v603, %v602
      %v620 = vpack.c.b16 %v605, %v604
      %v621 = vpack.c.b16 %v607, %v606
      %v622 = vpack.c.b16 %v609, %v608
      %v623 = vpack.c.b16 %v611, %v610
      %v624 = vpack.c.b16 %v613, %v612
      %636 = vmatprep.subr.bf16.mxu0 0
      %637 = vmatpush1.bf16.msra.mxu0 %v614
      %638 = vmatprep.subr.bf16.mxu0 0
      %639 = vmatpush1.bf16.msra.mxu0 %v615
      %640 = vmatprep.subr.bf16.mxu0 0
      %641 = vmatpush1.bf16.msra.mxu0 %v616
      %642 = vmatprep.subr.bf16.mxu0 0
      %643 = vmatpush1.bf16.msra.mxu0 %v617
      %644 = vmatprep.subr.bf16.mxu0 0
      %645 = vmatpush1.bf16.msra.mxu0 %v618
      %646 = vmatprep.subr.bf16.mxu0 0
      %647 = vmatpush1.bf16.msra.mxu0 %v619
      %648 = vmatprep.subr.bf16.mxu0 0
      %649 = vmatpush1.bf16.msra.mxu0 %v620
      %650 = vmatprep.subr.bf16.mxu0 0
      %651 = vmatpush1.bf16.msra.mxu0 %v621
      %652 = vmatprep.subr.bf16.mxu0 0
      %653 = vmatpush1.bf16.msra.mxu0 %v622
      %654 = vmatprep.subr.bf16.mxu0 0
      %655 = vmatpush1.bf16.msra.mxu0 %v623
      %656 = vmatprep.subr.bf16.mxu0 0
      %657 = vmatpush1.bf16.msra.mxu0 %v624
      %658 = vmatprep.subr.bf16.mxu0 0
      %659 = vmatpush1.bf16.msra.mxu0 0
      %660 = vmatprep.subr.bf16.mxu0 0
      %661 = vmatpush1.bf16.msra.mxu0 0
      %662 = vmatprep.subr.bf16.mxu0 0
      %663 = vmatpush1.bf16.msra.mxu0 0
      %664 = vmatprep.subr.bf16.mxu0 0
      %665 = vmatpush1.bf16.msra.mxu0 0
      %666 = vmatprep.subr.bf16.mxu0 0
      %667 = vmatpush1.bf16.msra.mxu0 0
      %668 = vmatprep.mubr.bf16.mxu0 %v330
      %669 = vmatmul.mubr.bf16.gmra.mrb[0].mxu0 %v256
      %v670 = vpop.f32.mrb[0].mxu0
      %v671 = vadd.f32 0.0, %v670
      %v672 = vpop.f32.mrb[0].mxu0
      %v673 = vpop.f32.mrb[0].mxu0
      %v674 = vadd.f32 0.0, %v673
      %v675 = vpop.f32.mrb[0].mxu0
      %676 = vmatprep.mubr.bf16.mxu0 %v333
      %677 = vmatmul.mubr.bf16.gmra.mrb[0].mxu0 %v258
      %v678 = vpop.f32.mrb[0].mxu0
      %v679 = vadd.f32 0.0, %v678
      %v680 = vpop.f32.mrb[0].mxu0
      %v681 = vpop.f32.mrb[0].mxu0
      %v682 = vpop.f32.mrb[0].mxu0
      %683 = vdwg.mxu0
      %vm686 = vcmask 1046528
      %v687 = vrot.slane %v671, 1
      %v688 = vrot.slane %v674, 1
      %v689 = vsel %vm686, %v687, %v688
      %v691 = vadd.f32 %v544, %v689
      %v693 = vrot.slane %v679, 1
      %v694 = vsel %vm686, %v688, %v693
      %v697 = vadd.f32 %v545, %v694
      %v698 = vadd.f32 %v546, %v693
      %s699 = scalar_lea.vmem %s2, 264
      %v700 = vld [vmem:[%s699] sm:$0xf]
      %v701 = vld [vmem:[%s699 + $0x4] sm:$0xf]
      %v702 = vld [vmem:[%s699 + $0x8] sm:$0xf]
      %v703 = vld [vmem:[%s699 + $0xc] sm:$0xf]
      %v704 = vld [vmem:[%s699 + $0x10] sm:$0xf]
      %v705 = vld [vmem:[%s699 + $0x14] sm:$0xf]
      %v706 = vld [vmem:[%s699 + $0x18] sm:$0xf]
      %v707 = vld [vmem:[%s699 + $0x1c] sm:$0xf]
      %v708 = vld [vmem:[%s699 + $0x20] sm:$0xf]
      %v709 = vld [vmem:[%s699 + $0x24] sm:$0xf]
      %v710 = vld [vmem:[%s699 + $0x28] sm:$0xf]
      %v711 = vld [vmem:[%s699 + $0x2c] sm:$0xf]
      %v712 = vld [vmem:[%s699 + $0x30] sm:$0xf]
      %v713 = vld [vmem:[%s699 + $0x34] sm:$0xf]
      %v714 = vld [vmem:[%s699 + $0x38] sm:$0xf]
      %v715 = vld [vmem:[%s699 + $0x3c] sm:$0xf]
      %v716 = vld [vmem:[%s699 + $0x40] sm:$0xf]
      %v717 = vld [vmem:[%s699 + $0x44] sm:$0xf]
      %v718 = vld [vmem:[%s699 + $0x48] sm:$0xf]
      %v719 = vld [vmem:[%s699 + $0x4c] sm:$0xf]
      %v720 = vld [vmem:[%s699 + $0x50] sm:$0xf]
      %v721 = vld [vmem:[%s699 + $0x54] sm:$0xf]
      %v744 = vunpack.c.l.b16 %v700
      %v745 = vunpack.c.l.b16 %v701
      %v746 = vunpack.c.l.b16 %v702
      %v747 = vunpack.c.l.b16 %v703
      %v748 = vunpack.c.l.b16 %v704
      %v749 = vunpack.c.l.b16 %v705
      %v750 = vunpack.c.l.b16 %v706
      %v751 = vunpack.c.l.b16 %v707
      %v752 = vunpack.c.l.b16 %v708
      %v753 = vunpack.c.l.b16 %v709
      %v754 = vunpack.c.l.b16 %v710
      %v755 = vunpack.c.l.b16 %v711
      %v756 = vunpack.c.l.b16 %v712
      %v757 = vunpack.c.l.b16 %v713
      %v758 = vunpack.c.l.b16 %v714
      %v759 = vunpack.c.l.b16 %v715
      %v760 = vunpack.c.l.b16 %v716
      %v761 = vunpack.c.l.b16 %v717
      %v762 = vunpack.c.l.b16 %v718
      %v763 = vunpack.c.l.b16 %v719
      %v764 = vunpack.c.l.b16 %v720
      %v765 = vunpack.c.l.b16 %v721
      %v766 = vpack.c.b16 %v745, %v744
      %v767 = vpack.c.b16 %v747, %v746
      %v768 = vpack.c.b16 %v749, %v748
      %v769 = vpack.c.b16 %v751, %v750
      %v770 = vpack.c.b16 %v753, %v752
      %v771 = vpack.c.b16 %v755, %v754
      %v772 = vpack.c.b16 %v757, %v756
      %v773 = vpack.c.b16 %v759, %v758
      %v774 = vpack.c.b16 %v761, %v760
      %v775 = vpack.c.b16 %v763, %v762
      %v776 = vpack.c.b16 %v765, %v764
      %788 = vmatprep.subr.bf16.mxu0 0
      %789 = vmatpush1.bf16.msra.mxu0 %v766
      %790 = vmatprep.subr.bf16.mxu0 0
      %791 = vmatpush1.bf16.msra.mxu0 %v767
      %792 = vmatprep.subr.bf16.mxu0 0
      %793 = vmatpush1.bf16.msra.mxu0 %v768
      %794 = vmatprep.subr.bf16.mxu0 0
      %795 = vmatpush1.bf16.msra.mxu0 %v769
      %796 = vmatprep.subr.bf16.mxu0 0
      %797 = vmatpush1.bf16.msra.mxu0 %v770
      %798 = vmatprep.subr.bf16.mxu0 0
      %799 = vmatpush1.bf16.msra.mxu0 %v771
      %800 = vmatprep.subr.bf16.mxu0 0
      %801 = vmatpush1.bf16.msra.mxu0 %v772
      %802 = vmatprep.subr.bf16.mxu0 0
      %803 = vmatpush1.bf16.msra.mxu0 %v773
      %804 = vmatprep.subr.bf16.mxu0 0
      %805 = vmatpush1.bf16.msra.mxu0 %v774
      %806 = vmatprep.subr.bf16.mxu0 0
      %807 = vmatpush1.bf16.msra.mxu0 %v775
      %808 = vmatprep.subr.bf16.mxu0 0
      %809 = vmatpush1.bf16.msra.mxu0 %v776
      %810 = vmatprep.subr.bf16.mxu0 0
      %811 = vmatpush1.bf16.msra.mxu0 0
      %812 = vmatprep.subr.bf16.mxu0 0
      %813 = vmatpush1.bf16.msra.mxu0 0
      %814 = vmatprep.subr.bf16.mxu0 0
      %815 = vmatpush1.bf16.msra.mxu0 0
      %816 = vmatprep.subr.bf16.mxu0 0
      %817 = vmatpush1.bf16.msra.mxu0 0
      %818 = vmatprep.subr.bf16.mxu0 0
      %819 = vmatpush1.bf16.msra.mxu0 0
      %820 = vmatprep.mubr.bf16.mxu0 %v491
      %821 = vmatmul.mubr.bf16.gmra.mrb[0].mxu0 %v418
      %v822 = vpop.f32.mrb[0].mxu0
      %v823 = vadd.f32 0.0, %v822
      %v824 = vpop.f32.mrb[0].mxu0
      %v825 = vpop.f32.mrb[0].mxu0
      %v826 = vadd.f32 0.0, %v825
      %v827 = vpop.f32.mrb[0].mxu0
      %828 = vmatprep.mubr.bf16.mxu0 %v494
      %829 = vmatmul.mubr.bf16.gmra.mrb[0].mxu0 %v420
      %v830 = vpop.f32.mrb[0].mxu0
      %v831 = vadd.f32 0.0, %v830
      %v832 = vpop.f32.mrb[0].mxu0
      %v833 = vpop.f32.mrb[0].mxu0
      %v834 = vpop.f32.mrb[0].mxu0
      %835 = vdwg.mxu0
      %v838 = vrot.slane %v823, 1
      %v839 = vrot.slane %v826, 1
      %v840 = vsel %vm686, %v838, %v839
      %v842 = vadd.f32 %v691, %v840
      %v844 = vrot.slane %v831, 1
      %v845 = vsel %vm686, %v839, %v844
      %v848 = vadd.f32 %v697, %v845
      %v849 = vadd.f32 %v698, %v844
      %s850 = scalar_lea.vmem %s2, 352
      %v851 = vld [vmem:[%s850] sm:$0xf]
      %v852 = vld [vmem:[%s850 + $0x4] sm:$0xf]
      %v853 = vld [vmem:[%s850 + $0x8] sm:$0xf]
      %v854 = vld [vmem:[%s850 + $0xc] sm:$0xf]
      %v855 = vld [vmem:[%s850 + $0x10] sm:$0xf]
      %v856 = vld [vmem:[%s850 + $0x14] sm:$0xf]
      %v857 = vld [vmem:[%s850 + $0x18] sm:$0xf]
      %v858 = vld [vmem:[%s850 + $0x1c] sm:$0xf]
      %v859 = vld [vmem:[%s850 + $0x20] sm:$0xf]
      %v860 = vld [vmem:[%s850 + $0x24] sm:$0xf]
      %v861 = vld [vmem:[%s850 + $0x28] sm:$0xf]
      %v862 = vld [vmem:[%s850 + $0x2c] sm:$0xf]
      %v863 = vld [vmem:[%s850 + $0x30] sm:$0xf]
      %v864 = vld [vmem:[%s850 + $0x34] sm:$0xf]
      %v865 = vld [vmem:[%s850 + $0x38] sm:$0xf]
      %v866 = vld [vmem:[%s850 + $0x3c] sm:$0xf]
      %v867 = vld [vmem:[%s850 + $0x40] sm:$0xf]
      %v868 = vld [vmem:[%s850 + $0x44] sm:$0xf]
      %v869 = vld [vmem:[%s850 + $0x48] sm:$0xf]
      %v870 = vld [vmem:[%s850 + $0x4c] sm:$0xf]
      %v871 = vld [vmem:[%s850 + $0x50] sm:$0xf]
      %v872 = vld [vmem:[%s850 + $0x54] sm:$0xf]
      %v895 = vunpack.c.l.b16 %v851
      %v896 = vunpack.c.l.b16 %v852
      %v897 = vunpack.c.l.b16 %v853
      %v898 = vunpack.c.l.b16 %v854
      %v899 = vunpack.c.l.b16 %v855
      %v900 = vunpack.c.l.b16 %v856
      %v901 = vunpack.c.l.b16 %v857
      %v902 = vunpack.c.l.b16 %v858
      %v903 = vunpack.c.l.b16 %v859
      %v904 = vunpack.c.l.b16 %v860
      %v905 = vunpack.c.l.b16 %v861
      %v906 = vunpack.c.l.b16 %v862
      %v907 = vunpack.c.l.b16 %v863
      %v908 = vunpack.c.l.b16 %v864
      %v909 = vunpack.c.l.b16 %v865
      %v910 = vunpack.c.l.b16 %v866
      %v911 = vunpack.c.l.b16 %v867
      %v912 = vunpack.c.l.b16 %v868
      %v913 = vunpack.c.l.b16 %v869
      %v914 = vunpack.c.l.b16 %v870
      %v915 = vunpack.c.l.b16 %v871
      %v916 = vunpack.c.l.b16 %v872
      %v917 = vpack.c.b16 %v896, %v895
      %v918 = vpack.c.b16 %v898, %v897
      %v919 = vpack.c.b16 %v900, %v899
      %v920 = vpack.c.b16 %v902, %v901
      %v921 = vpack.c.b16 %v904, %v903
      %v922 = vpack.c.b16 %v906, %v905
      %v923 = vpack.c.b16 %v908, %v907
      %v924 = vpack.c.b16 %v910, %v909
      %v925 = vpack.c.b16 %v912, %v911
      %v926 = vpack.c.b16 %v914, %v913
      %v927 = vpack.c.b16 %v916, %v915
      %939 = vmatprep.subr.bf16.mxu0 0
      %940 = vmatpush1.bf16.msra.mxu0 %v917
      %941 = vmatprep.subr.bf16.mxu0 0
      %942 = vmatpush1.bf16.msra.mxu0 %v918
      %943 = vmatprep.subr.bf16.mxu0 0
      %944 = vmatpush1.bf16.msra.mxu0 %v919
      %945 = vmatprep.subr.bf16.mxu0 0
      %946 = vmatpush1.bf16.msra.mxu0 %v920
      %947 = vmatprep.subr.bf16.mxu0 0
      %948 = vmatpush1.bf16.msra.mxu0 %v921
      %949 = vmatprep.subr.bf16.mxu0 0
      %950 = vmatpush1.bf16.msra.mxu0 %v922
      %951 = vmatprep.subr.bf16.mxu0 0
      %952 = vmatpush1.bf16.msra.mxu0 %v923
      %953 = vmatprep.subr.bf16.mxu0 0
      %954 = vmatpush1.bf16.msra.mxu0 %v924
      %955 = vmatprep.subr.bf16.mxu0 0
      %956 = vmatpush1.bf16.msra.mxu0 %v925
      %957 = vmatprep.subr.bf16.mxu0 0
      %958 = vmatpush1.bf16.msra.mxu0 %v926
      %959 = vmatprep.subr.bf16.mxu0 0
      %960 = vmatpush1.bf16.msra.mxu0 %v927
      %961 = vmatprep.subr.bf16.mxu0 0
      %962 = vmatpush1.bf16.msra.mxu0 0
      %963 = vmatprep.subr.bf16.mxu0 0
      %964 = vmatpush1.bf16.msra.mxu0 0
      %965 = vmatprep.subr.bf16.mxu0 0
      %966 = vmatpush1.bf16.msra.mxu0 0
      %967 = vmatprep.subr.bf16.mxu0 0
      %968 = vmatpush1.bf16.msra.mxu0 0
      %969 = vmatprep.subr.bf16.mxu0 0
      %970 = vmatpush1.bf16.msra.mxu0 0
      %971 = vmatprep.mubr.bf16.mxu0 %v330
      %972 = vmatmul.mubr.bf16.gmra.mrb[0].mxu0 %v256
      %v973 = vpop.f32.mrb[0].mxu0
      %v974 = vadd.f32 0.0, %v973
      %v975 = vpop.f32.mrb[0].mxu0
      %v976 = vpop.f32.mrb[0].mxu0
      %v977 = vadd.f32 0.0, %v976
      %v978 = vpop.f32.mrb[0].mxu0
      %979 = vmatprep.mubr.bf16.mxu0 %v333
      %980 = vmatmul.mubr.bf16.gmra.mrb[0].mxu0 %v258
      %v981 = vpop.f32.mrb[0].mxu0
      %v982 = vadd.f32 0.0, %v981
      %v983 = vpop.f32.mrb[0].mxu0
      %v984 = vpop.f32.mrb[0].mxu0
      %v985 = vpop.f32.mrb[0].mxu0
      %986 = vdwg.mxu0
      %vm989 = vcmask 1045504
      %v990 = vrot.slane %v974, 2
      %v991 = vrot.slane %v977, 2
      %v992 = vsel %vm989, %v990, %v991
      %v994 = vadd.f32 %v842, %v992
      %v996 = vrot.slane %v982, 2
      %v997 = vsel %vm989, %v991, %v996
      %v1000 = vadd.f32 %v848, %v997
      %v1001 = vadd.f32 %v849, %v996
      %s1002 = scalar_lea.vmem %s2, 440
      %v1003 = vld [vmem:[%s1002] sm:$0xf]
      %v1004 = vld [vmem:[%s1002 + $0x4] sm:$0xf]
      %v1005 = vld [vmem:[%s1002 + $0x8] sm:$0xf]
      %v1006 = vld [vmem:[%s1002 + $0xc] sm:$0xf]
      %v1007 = vld [vmem:[%s1002 + $0x10] sm:$0xf]
      %v1008 = vld [vmem:[%s1002 + $0x14] sm:$0xf]
      %v1009 = vld [vmem:[%s1002 + $0x18] sm:$0xf]
      %v1010 = vld [vmem:[%s1002 + $0x1c] sm:$0xf]
      %v1011 = vld [vmem:[%s1002 + $0x20] sm:$0xf]
      %v1012 = vld [vmem:[%s1002 + $0x24] sm:$0xf]
      %v1013 = vld [vmem:[%s1002 + $0x28] sm:$0xf]
      %v1014 = vld [vmem:[%s1002 + $0x2c] sm:$0xf]
      %v1015 = vld [vmem:[%s1002 + $0x30] sm:$0xf]
      %v1016 = vld [vmem:[%s1002 + $0x34] sm:$0xf]
      %v1017 = vld [vmem:[%s1002 + $0x38] sm:$0xf]
      %v1018 = vld [vmem:[%s1002 + $0x3c] sm:$0xf]
      %v1019 = vld [vmem:[%s1002 + $0x40] sm:$0xf]
      %v1020 = vld [vmem:[%s1002 + $0x44] sm:$0xf]
      %v1021 = vld [vmem:[%s1002 + $0x48] sm:$0xf]
      %v1022 = vld [vmem:[%s1002 + $0x4c] sm:$0xf]
      %v1023 = vld [vmem:[%s1002 + $0x50] sm:$0xf]
      %v1024 = vld [vmem:[%s1002 + $0x54] sm:$0xf]
      %v1047 = vunpack.c.l.b16 %v1003
      %v1048 = vunpack.c.l.b16 %v1004
      %v1049 = vunpack.c.l.b16 %v1005
      %v1050 = vunpack.c.l.b16 %v1006
      %v1051 = vunpack.c.l.b16 %v1007
      %v1052 = vunpack.c.l.b16 %v1008
      %v1053 = vunpack.c.l.b16 %v1009
      %v1054 = vunpack.c.l.b16 %v1010
      %v1055 = vunpack.c.l.b16 %v1011
      %v1056 = vunpack.c.l.b16 %v1012
      %v1057 = vunpack.c.l.b16 %v1013
      %v1058 = vunpack.c.l.b16 %v1014
      %v1059 = vunpack.c.l.b16 %v1015
      %v1060 = vunpack.c.l.b16 %v1016
      %v1061 = vunpack.c.l.b16 %v1017
      %v1062 = vunpack.c.l.b16 %v1018
      %v1063 = vunpack.c.l.b16 %v1019
      %v1064 = vunpack.c.l.b16 %v1020
      %v1065 = vunpack.c.l.b16 %v1021
      %v1066 = vunpack.c.l.b16 %v1022
      %v1067 = vunpack.c.l.b16 %v1023
      %v1068 = vunpack.c.l.b16 %v1024
      %v1069 = vpack.c.b16 %v1048, %v1047
      %v1070 = vpack.c.b16 %v1050, %v1049
      %v1071 = vpack.c.b16 %v1052, %v1051
      %v1072 = vpack.c.b16 %v1054, %v1053
      %v1073 = vpack.c.b16 %v1056, %v1055
      %v1074 = vpack.c.b16 %v1058, %v1057
      %v1075 = vpack.c.b16 %v1060, %v1059
      %v1076 = vpack.c.b16 %v1062, %v1061
      %v1077 = vpack.c.b16 %v1064, %v1063
      %v1078 = vpack.c.b16 %v1066, %v1065
      %v1079 = vpack.c.b16 %v1068, %v1067
      %1091 = vmatprep.subr.bf16.mxu0 0
      %1092 = vmatpush1.bf16.msra.mxu0 %v1069
      %1093 = vmatprep.subr.bf16.mxu0 0
      %1094 = vmatpush1.bf16.msra.mxu0 %v1070
      %1095 = vmatprep.subr.bf16.mxu0 0
      %1096 = vmatpush1.bf16.msra.mxu0 %v1071
      %1097 = vmatprep.subr.bf16.mxu0 0
      %1098 = vmatpush1.bf16.msra.mxu0 %v1072
      %1099 = vmatprep.subr.bf16.mxu0 0
      %1100 = vmatpush1.bf16.msra.mxu0 %v1073
      %1101 = vmatprep.subr.bf16.mxu0 0
      %1102 = vmatpush1.bf16.msra.mxu0 %v1074
      %1103 = vmatprep.subr.bf16.mxu0 0
      %1104 = vmatpush1.bf16.msra.mxu0 %v1075
      %1105 = vmatprep.subr.bf16.mxu0 0
      %1106 = vmatpush1.bf16.msra.mxu0 %v1076
      %1107 = vmatprep.subr.bf16.mxu0 0
      %1108 = vmatpush1.bf16.msra.mxu0 %v1077
      %1109 = vmatprep.subr.bf16.mxu0 0
      %1110 = vmatpush1.bf16.msra.mxu0 %v1078
      %1111 = vmatprep.subr.bf16.mxu0 0
      %1112 = vmatpush1.bf16.msra.mxu0 %v1079
      %1113 = vmatprep.subr.bf16.mxu0 0
      %1114 = vmatpush1.bf16.msra.mxu0 0
      %1115 = vmatprep.subr.bf16.mxu0 0
      %1116 = vmatpush1.bf16.msra.mxu0 0
      %1117 = vmatprep.subr.bf16.mxu0 0
      %1118 = vmatpush1.bf16.msra.mxu0 0
      %1119 = vmatprep.subr.bf16.mxu0 0
      %1120 = vmatpush1.bf16.msra.mxu0 0
      %1121 = vmatprep.subr.bf16.mxu0 0
      %1122 = vmatpush1.bf16.msra.mxu0 0
      %1123 = vmatprep.mubr.bf16.mxu0 %v491
      %1124 = vmatmul.mubr.bf16.gmra.mrb[0].mxu0 %v418
      %v1125 = vpop.f32.mrb[0].mxu0
      %v1126 = vadd.f32 0.0, %v1125
      %v1127 = vpop.f32.mrb[0].mxu0
      %v1128 = vpop.f32.mrb[0].mxu0
      %v1129 = vadd.f32 0.0, %v1128
      %v1130 = vpop.f32.mrb[0].mxu0
      %1131 = vmatprep.mubr.bf16.mxu0 %v494
      %1132 = vmatmul.mubr.bf16.gmra.mrb[0].mxu0 %v420
      %v1133 = vpop.f32.mrb[0].mxu0
      %v1134 = vadd.f32 0.0, %v1133
      %v1135 = vpop.f32.mrb[0].mxu0
      %v1136 = vpop.f32.mrb[0].mxu0
      %v1137 = vpop.f32.mrb[0].mxu0
      %1138 = vdwg.mxu0
      %v1141 = vrot.slane %v1126, 2
      %v1142 = vrot.slane %v1129, 2
      %v1143 = vsel %vm989, %v1141, %v1142
      %v1145 = vadd.f32 %v994, %v1143
      %v1147 = vrot.slane %v1134, 2
      %v1148 = vsel %vm989, %v1142, %v1147
      %v1151 = vadd.f32 %v1000, %v1148
      %v1152 = vadd.f32 %v1001, %v1147
      %s1153 = scalar_lea.vmem %s2, 528
      %v1154 = vld [vmem:[%s1153] sm:$0xf]
      %v1155 = vld [vmem:[%s1153 + $0x4] sm:$0xf]
      %v1156 = vld [vmem:[%s1153 + $0x8] sm:$0xf]
      %v1157 = vld [vmem:[%s1153 + $0xc] sm:$0xf]
      %v1158 = vld [vmem:[%s1153 + $0x10] sm:$0xf]
      %v1159 = vld [vmem:[%s1153 + $0x14] sm:$0xf]
      %v1160 = vld [vmem:[%s1153 + $0x18] sm:$0xf]
      %v1161 = vld [vmem:[%s1153 + $0x1c] sm:$0xf]
      %v1162 = vld [vmem:[%s1153 + $0x20] sm:$0xf]
      %v1163 = vld [vmem:[%s1153 + $0x24] sm:$0xf]
      %v1164 = vld [vmem:[%s1153 + $0x28] sm:$0xf]
      %v1165 = vld [vmem:[%s1153 + $0x2c] sm:$0xf]
      %v1166 = vld [vmem:[%s1153 + $0x30] sm:$0xf]
      %v1167 = vld [vmem:[%s1153 + $0x34] sm:$0xf]
      %v1168 = vld [vmem:[%s1153 + $0x38] sm:$0xf]
      %v1169 = vld [vmem:[%s1153 + $0x3c] sm:$0xf]
      %v1170 = vld [vmem:[%s1153 + $0x40] sm:$0xf]
      %v1171 = vld [vmem:[%s1153 + $0x44] sm:$0xf]
      %v1172 = vld [vmem:[%s1153 + $0x48] sm:$0xf]
      %v1173 = vld [vmem:[%s1153 + $0x4c] sm:$0xf]
      %v1174 = vld [vmem:[%s1153 + $0x50] sm:$0xf]
      %v1175 = vld [vmem:[%s1153 + $0x54] sm:$0xf]
      %v1198 = vunpack.c.l.b16 %v1154
      %v1199 = vunpack.c.l.b16 %v1155
      %v1200 = vunpack.c.l.b16 %v1156
      %v1201 = vunpack.c.l.b16 %v1157
      %v1202 = vunpack.c.l.b16 %v1158
      %v1203 = vunpack.c.l.b16 %v1159
      %v1204 = vunpack.c.l.b16 %v1160
      %v1205 = vunpack.c.l.b16 %v1161
      %v1206 = vunpack.c.l.b16 %v1162
      %v1207 = vunpack.c.l.b16 %v1163
      %v1208 = vunpack.c.l.b16 %v1164
      %v1209 = vunpack.c.l.b16 %v1165
      %v1210 = vunpack.c.l.b16 %v1166
      %v1211 = vunpack.c.l.b16 %v1167
      %v1212 = vunpack.c.l.b16 %v1168
      %v1213 = vunpack.c.l.b16 %v1169
      %v1214 = vunpack.c.l.b16 %v1170
      %v1215 = vunpack.c.l.b16 %v1171
      %v1216 = vunpack.c.l.b16 %v1172
      %v1217 = vunpack.c.l.b16 %v1173
      %v1218 = vunpack.c.l.b16 %v1174
      %v1219 = vunpack.c.l.b16 %v1175
      %v1220 = vpack.c.b16 %v1199, %v1198
      %v1221 = vpack.c.b16 %v1201, %v1200
      %v1222 = vpack.c.b16 %v1203, %v1202
      %v1223 = vpack.c.b16 %v1205, %v1204
      %v1224 = vpack.c.b16 %v1207, %v1206
      %v1225 = vpack.c.b16 %v1209, %v1208
      %v1226 = vpack.c.b16 %v1211, %v1210
      %v1227 = vpack.c.b16 %v1213, %v1212
      %v1228 = vpack.c.b16 %v1215, %v1214
      %v1229 = vpack.c.b16 %v1217, %v1216
      %v1230 = vpack.c.b16 %v1219, %v1218
      %1242 = vmatprep.subr.bf16.mxu0 0
      %1243 = vmatpush1.bf16.msra.mxu0 %v1220
      %1244 = vmatprep.subr.bf16.mxu0 0
      %1245 = vmatpush1.bf16.msra.mxu0 %v1221
      %1246 = vmatprep.subr.bf16.mxu0 0
      %1247 = vmatpush1.bf16.msra.mxu0 %v1222
      %1248 = vmatprep.subr.bf16.mxu0 0
      %1249 = vmatpush1.bf16.msra.mxu0 %v1223
      %1250 = vmatprep.subr.bf16.mxu0 0
      %1251 = vmatpush1.bf16.msra.mxu0 %v1224
      %1252 = vmatprep.subr.bf16.mxu0 0
      %1253 = vmatpush1.bf16.msra.mxu0 %v1225
      %1254 = vmatprep.subr.bf16.mxu0 0
      %1255 = vmatpush1.bf16.msra.mxu0 %v1226
      %1256 = vmatprep.subr.bf16.mxu0 0
      %1257 = vmatpush1.bf16.msra.mxu0 %v1227
      %1258 = vmatprep.subr.bf16.mxu0 0
      %1259 = vmatpush1.bf16.msra.mxu0 %v1228
      %1260 = vmatprep.subr.bf16.mxu0 0
      %1261 = vmatpush1.bf16.msra.mxu0 %v1229
      %1262 = vmatprep.subr.bf16.mxu0 0
      %1263 = vmatpush1.bf16.msra.mxu0 %v1230
      %1264 = vmatprep.subr.bf16.mxu0 0
      %1265 = vmatpush1.bf16.msra.mxu0 0
      %1266 = vmatprep.subr.bf16.mxu0 0
      %1267 = vmatpush1.bf16.msra.mxu0 0
      %1268 = vmatprep.subr.bf16.mxu0 0
      %1269 = vmatpush1.bf16.msra.mxu0 0
      %1270 = vmatprep.subr.bf16.mxu0 0
      %1271 = vmatpush1.bf16.msra.mxu0 0
      %1272 = vmatprep.subr.bf16.mxu0 0
      %1273 = vmatpush1.bf16.msra.mxu0 0
      %1274 = vmatprep.mubr.bf16.mxu0 %v330
      %1275 = vmatmul.mubr.bf16.gmra.mrb[0].mxu0 %v256
      %v1276 = vpop.f32.mrb[0].mxu0
      %v1277 = vadd.f32 0.0, %v1276
      %v1278 = vpop.f32.mrb[0].mxu0
      %v1279 = vpop.f32.mrb[0].mxu0
      %v1280 = vadd.f32 0.0, %v1279
      %v1281 = vpop.f32.mrb[0].mxu0
      %1282 = vmatprep.mubr.bf16.mxu0 %v333
      %1283 = vmatmul.mubr.bf16.gmra.mrb[0].mxu0 %v258
      %v1284 = vpop.f32.mrb[0].mxu0
      %v1285 = vadd.f32 0.0, %v1284
      %v1286 = vpop.f32.mrb[0].mxu0
      %v1287 = vpop.f32.mrb[0].mxu0
      %v1288 = vpop.f32.mrb[0].mxu0
      %1289 = vdwg.mxu0
      %vm1292 = vcmask 1044480
      %v1293 = vrot.slane %v1277, 3
      %v1294 = vrot.slane %v1280, 3
      %v1295 = vsel %vm1292, %v1293, %v1294
      %v1297 = vadd.f32 %v1145, %v1295
      %v1299 = vrot.slane %v1285, 3
      %v1300 = vsel %vm1292, %v1294, %v1299
      %v1303 = vadd.f32 %v1151, %v1300
      %v1304 = vadd.f32 %v1152, %v1299
      %v1307 = vrot.slane %v1303, 3
      %v1308 = vrot.slane %v1304, 3
      %v1309 = vsel %vm1292, %v1307, %v1308
      %v1311 = vld [vmem:[%s3] sm:$0x1]
      %v1313 = vlaneseq
      %v1314 = vshrl.u32 %v1313, 7
      %v1315 = vsub.s32 0, %v1314
      %v1316 = vrot.slane %v1311, %v1315
      %v1318 = vadd.f32 %v1297, %v1316
      %v1319 = vadd.f32 %v1309, %v1316
      %v1320 = vmax.f32 %v1318, 0.0
      %v1321 = vmax.f32 %v1319, 0.0
      %1322 = vst [vmem:[%s217] sm:$0xff] %v1320
      %1323 = vst [vmem:[%s217 + $0x8] sm:$0xff] %v1321
      %p1324 = scmp.lt.s32.totalorder %s15, 1
      %s1325 = scalar_select %p1324, %s15, 1
      %s1326 = smul.addr %s1325, 2
      %s1327 = smul.addr %s1326, 8
      %s1328 = scalar_lea.vmem %s4, %s1327
      // Predicated region
      $region37: #{base3d_block_forward.1} parent=35 // pred_check
        %p1329 = pneg %p127
      $region38: #{base3d_block_forward.1} parent=35 // pred_check_branch
        %1331 = sbr.rel (%p1329) target = $region40
      $region39: #{base3d_block_forward.1} parent=35 // pred_region
        _
      $region40: #{base3d_block_forward.1} parent=35 // pred_fallthru
        _
    $region36: #{base3d_block_forward.1} parent=5 // pred_fallthru
      _
    %p1332 = scmp.le.s32.totalorder 2, %s10
    // Predicated region
    $region41: #{base3d_block_forward.1} parent=5 // pred_check
      %p1333 = pneg %p1332
    $region42: #{base3d_block_forward.1} parent=5 // pred_check_branch
      %1335 = sbr.rel (%p1333) target = $region44
    $region43: #{base3d_block_forward.1} parent=5 // pred_region
      %s1336 = ssub.s32 %s10, 2
      // Predicated region
      $region45: #{base3d_block_forward.1} parent=43 // pred_check
        %p1337 = pneg %p133
      $region46: #{base3d_block_forward.1} parent=43 // pred_check_branch
        %1339 = sbr.rel (%p1337) target = $region48
      $region47: #{base3d_block_forward.1} parent=43 // pred_region
        %p1340 = scmp.lt.s32.totalorder %s16, 1
        %s1341 = scalar_select %p1340, %s16, 1
        %s1342 = smul.addr %s1341, 2
        %s1343 = smul.addr %s1342, 8
        %s1344 = scalar_lea.vmem %s4, %s1343
      $region48: #{base3d_block_forward.1} parent=43 // pred_fallthru
        _
    $region44: #{base3d_block_forward.1} parent=5 // pred_fallthru
      _
  $region6: #{base3d_block_forward.1} parent=0 // loop_footer
    %s14 = sadd.s32 1, %s10
  $region7: #{base3d_block_forward.1} parent=0 // loop_footer_branch
    %9 = sbr.rel target = $region3
  $region8: #{base3d_block_forward.1} parent=0 // loop_exit
    _

</llo_original>
